<compile_context>
chip_gen: v7x
topology: tpu7x:2x2x1
jax: 0.10.0
libtpu: 0.0.40
codegen_flags: <defaults>
</compile_context>

<pallas_src>
import functools

import jax
import jax.numpy as jnp
from jax.experimental import pallas as pl
from jax.experimental.pallas import tpu as pltpu

ALPHA = 0.2          # LeakyReLU negative slope
EPS = 1e-5           # BatchNorm eps
TILE_TARGET = 1024   # target lane-tile size over the P = N*D*H*W axis

_VMEM_LIMIT = None


def _vmem_limit():
    """Generation-aware VMEM budget: 3/4 of physical (48 MiB v7x, 96 MiB v5e/v6e)."""
    global _VMEM_LIMIT
    if _VMEM_LIMIT is None:
        cap = 64 * 1024 * 1024
        try:
            cap = int(getattr(pltpu.get_tpu_info(), "vmem_capacity_bytes", cap))
        except Exception:
            pass
        _VMEM_LIMIT = min(int(cap * 3 // 4), 100 * 1024 * 1024)
    return _VMEM_LIMIT


def _pick_tile(p):
    """Largest multiple of 128 that divides p and is <= TILE_TARGET, else full p."""
    best = None
    t = 128
    while t <= min(p, TILE_TARGET):
        if p % t == 0:
            best = t
        t += 128
    return best if best is not None else p


# ----------------------------------------------------------------------------
# Pallas kernels
# ----------------------------------------------------------------------------
def _matmul_kernel(w_ref, p_ref, o_ref):
    # w_ref: (Cout, Kc) bf16   p_ref: (Kc, TILE_P) bf16   o_ref: (Cout, TILE_P) f32
    o_ref[...] = jnp.dot(w_ref[...], p_ref[...], preferred_element_type=jnp.float32)


def _bn_act_kernel(y_ref, a_ref, b_ref, o_ref):
    # y_ref/o_ref: (Cout, TILE_P) f32   a_ref/b_ref: (Cout, 1) folded BN scale/shift
    y = y_ref[...] * a_ref[...] + b_ref[...]
    o_ref[...] = jnp.where(y >= 0.0, y, ALPHA * y)


def _bn_act_res_kernel(y_ref, a_ref, b_ref, r_ref, o_ref):
    y = y_ref[...] * a_ref[...] + b_ref[...]
    o_ref[...] = jnp.where(y >= 0.0, y, ALPHA * y) + r_ref[...]


# ----------------------------------------------------------------------------
# Pallas wrappers
# ----------------------------------------------------------------------------
def conv_matmul(w_g, patches_g):
    """Batched lane-dense conv matmul: (G, Cout, Kc) @ (G, Kc, P) -> (G, Cout, P) f32."""
    g, cout, kc = w_g.shape
    p = patches_g.shape[2]
    tp = _pick_tile(p)
    grid = (g, p // tp)
    return pl.pallas_call(
        _matmul_kernel,
        out_shape=jax.ShapeDtypeStruct((g, cout, p), jnp.float32),
        grid=grid,
        in_specs=[
            pl.BlockSpec((None, cout, kc), lambda gi, ti: (gi, 0, 0)),   # resident weight
            pl.BlockSpec((None, kc, tp), lambda gi, ti: (gi, 0, ti)),    # streamed patches
        ],
        out_specs=pl.BlockSpec((None, cout, tp), lambda gi, ti: (gi, 0, ti)),
        compiler_params=pltpu.CompilerParams(
            dimension_semantics=("parallel", "parallel"),
            vmem_limit_bytes=_vmem_limit(),
        ),
    )(w_g, patches_g)


def bn_act_apply(y, a, b, res=None):
    """y*a + b -> LeakyReLU(0.2) [-> + res], gridded over lane-dense P tiles."""
    cout, p = y.shape
    tp = _pick_tile(p)
    grid = (p // tp,)
    row_spec = pl.BlockSpec((cout, tp), lambda i: (0, i))
    vec_spec = pl.BlockSpec((cout, 1), lambda i: (0, 0))
    a2 = a.reshape(cout, 1).astype(jnp.float32)
    b2 = b.reshape(cout, 1).astype(jnp.float32)
    if res is None:
        kernel = _bn_act_kernel
        in_specs = [row_spec, vec_spec, vec_spec]
        args = (y, a2, b2)
    else:
        kernel = _bn_act_res_kernel
        in_specs = [row_spec, vec_spec, vec_spec, row_spec]
        args = (y, a2, b2, res.astype(jnp.float32))
    return pl.pallas_call(
        kernel,
        out_shape=jax.ShapeDtypeStruct((cout, p), jnp.float32),
        grid=grid,
        in_specs=in_specs,
        out_specs=row_spec,
        compiler_params=pltpu.CompilerParams(
            dimension_semantics=("parallel",),
            vmem_limit_bytes=_vmem_limit(),
        ),
    )(*args)


# ----------------------------------------------------------------------------
# JAX glue: im2col (channel-first, transposed layout) + BN stat folding
# ----------------------------------------------------------------------------
def _im2col_cf(xp, k, stride):
    """xp: padded (C, N, Dp, Hp, Wp) -> patches (k^3*C, N*Do*Ho*Wo), rows tap-major / cin-minor."""
    c, n, dp, hp, wp = xp.shape
    do = (dp - k) // stride + 1
    ho = (hp - k) // stride + 1
    wo = (wp - k) // stride + 1
    rows = []
    for kd in range(k):
        for kh in range(k):
            for kw in range(k):
                sl = jax.lax.slice(
                    xp,
                    (0, 0, kd, kh, kw),
                    (c, n, kd + stride * (do - 1) + 1,
                     kh + stride * (ho - 1) + 1,
                     kw + stride * (wo - 1) + 1),
                    (1, 1, stride, stride, stride))
                rows.append(sl.reshape(c, n * do * ho * wo))
    return jnp.concatenate(rows, axis=0), (n, do, ho, wo)


def _bn_fold(y2d, gamma, beta):
    """Training-mode BN stats over all rows (two-pass, biased var) folded to scale/shift."""
    mean = jnp.mean(y2d, axis=1)
    var = jnp.mean(jnp.square(y2d - mean[:, None]), axis=1)
    a = gamma * jax.lax.rsqrt(var + EPS)
    b = beta - mean * a
    return a, b


# ----------------------------------------------------------------------------
# Blocks
# ----------------------------------------------------------------------------
def conv3d_bn_block(x, params, stride, residual=None):
    """Conv3d(k=3, pad=1, bias=False) + BN(train) + LeakyReLU(0.2) [+ residual]. x: (C,N,D,H,W)."""
    w, gamma, beta = params["w"], params["gamma"], params["beta"]
    k, cin, cout = w.shape[0], w.shape[3], w.shape[4]
    xp = jnp.pad(x.astype(jnp.bfloat16),
                 ((0, 0), (0, 0), (1, 1), (1, 1), (1, 1)))
    patches, (n, do, ho, wo) = _im2col_cf(xp, k, stride)
    w_flat = jnp.transpose(w.reshape(k * k * k * cin, cout)).astype(jnp.bfloat16)
    y = conv_matmul(w_flat[None], patches[None])[0]            # (Cout, P) f32
    a, b = _bn_fold(y, gamma, beta)
    res = None if residual is None else residual.reshape(cout, -1)
    out = bn_act_apply(y, a, b, res)
    return out.reshape(cout, n, do, ho, wo)


def transconv3d_bn_block(x, params, residual=None):
    """ConvTranspose3d(k=4, s=2, p=1, bias=False) + BN(train) + LeakyReLU(0.2) [+ residual].

    Polyphase decomposition: output parity (rd, rh, rw) is a 2x2x2 stride-1 conv
    of x (padded by (1-r, r) per dim) with sub-kernel W[rd::2, rh::2, rw::2]
    (weights stored in the equivalent-conv orientation). The 8 parity convs are
    batched into one gridded matmul and interleaved back to full resolution.
    """
    wt, gamma, beta = params["w"], params["gamma"], params["beta"]
    cin, cout = wt.shape[3], wt.shape[4]
    c, n, d, h, ww = x.shape
    xb = x.astype(jnp.bfloat16)
    pat_list, w_list = [], []
    for rd in range(2):
        for rh in range(2):
            for rw in range(2):
                xp = jnp.pad(xb, ((0, 0), (0, 0),
                                  (1 - rd, rd), (1 - rh, rh), (1 - rw, rw)))
                pat, _ = _im2col_cf(xp, 2, 1)               # (8*Cin, N*D*H*W)
                pat_list.append(pat)
                wsub = wt[rd::2, rh::2, rw::2, :, :]        # (2,2,2,Cin,Cout)
                w_list.append(jnp.transpose(wsub.reshape(8 * cin, cout)))
    patches_g = jnp.stack(pat_list, axis=0)                 # (8, 8*Cin, P_half) bf16
    w_g = jnp.stack(w_list, axis=0).astype(jnp.bfloat16)    # (8, Cout, 8*Cin)
    yg = conv_matmul(w_g, patches_g)                        # (8, Cout, P_half) f32
    # Interleave parities -> (Cout, N, 2D, 2H, 2W), flattened lane-major.
    y = yg.reshape(2, 2, 2, cout, n, d, h, ww)
    y = jnp.transpose(y, (3, 4, 5, 0, 6, 1, 7, 2)).reshape(cout, n * 8 * d * h * ww)
    a, b = _bn_fold(y, gamma, beta)
    res = None if residual is None else residual.reshape(cout, -1)
    out = bn_act_apply(y, a, b, res)
    return out.reshape(cout, n, 2 * d, 2 * h, 2 * ww)


# ----------------------------------------------------------------------------
# Hourglass forward (mirrors the PyTorch control flow; shape checks are static)
# ----------------------------------------------------------------------------
def hourglass_forward(x_ncdhw, params):
    x = jnp.transpose(x_ncdhw, (1, 0, 2, 3, 4))  # NCDHW -> (C, N, D, H, W)

    x1 = conv3d_bn_block(x, params["conv1"], stride=1)
    x1 = conv3d_bn_block(x1, params["conv2"], stride=1)
    if x1.shape[2] % 2 != 0:  # D axis; pad W right and H bottom (PyTorch F.pad(0,1,0,1,0,0))
        x1 = jnp.pad(x1, ((0, 0), (0, 0), (0, 0), (0, 1), (0, 1)))

    x2 = conv3d_bn_block(x1, params["conv3"], stride=2)
    x2 = conv3d_bn_block(x2, params["conv4"], stride=1)
    if x2.shape[2] % 2 != 0:
        x2 = jnp.pad(x2, ((0, 0), (0, 0), (0, 0), (0, 1), (0, 1)))

    x3 = conv3d_bn_block(x2, params["conv5"], stride=2)
    x3 = conv3d_bn_block(x3, params["conv6"], stride=1)

    # x4 = conv7(x3); x4 += x2   (residual fused into the apply kernel)
    x4 = transconv3d_bn_block(x3, params["conv7"], residual=x2)

    # x5 = conv8(x4); (maybe pad x1); x5 += x1   (residual fused into the apply kernel)
    d5 = 2 * x4.shape[2]  # conv8 output depth, known statically
    if x1.shape[2] != d5:  # PyTorch F.pad(x1, (0,0,1,1,1,1)): pad H and D by (1,1)
        x1 = jnp.pad(x1, ((0, 0), (0, 0), (1, 1), (1, 1), (0, 0)))
    x5 = transconv3d_bn_block(x4, params["conv8"], residual=x1)

    return jnp.transpose(x5, (1, 0, 2, 3, 4))  # (C,N,D,H,W) -> NCDHW


# ----------------------------------------------------------------------------
# Deterministic synthetic parameter init (shapes follow Hourglass.__init__)
# ----------------------------------------------------------------------------
def init_params(key, filters):
    f = filters
    specs = {
        "conv1": (3, f, f),
        "conv2": (3, f, f),
        "conv3": (3, f, 2 * f),
        "conv4": (3, 2 * f, 2 * f),
        "conv5": (3, 2 * f, 2 * f),
        "conv6": (3, 2 * f, 2 * f),
        "conv7": (4, 2 * f, 2 * f),   # transposed conv (equivalent-conv weight layout)
        "conv8": (4, 2 * f, f),       # transposed conv
    }
    params = {}
    keys = jax.random.split(key, 3 * len(specs))
    i = 0
    for name, (k, cin, cout) in specs.items():
        wk, gk, bk = keys[i], keys[i + 1], keys[i + 2]
        i += 3
        params[name] = {
            "w": 0.1 * jax.random.normal(wk, (k, k, k, cin, cout), jnp.float32),
            "gamma": 1.0 + 0.05 * jax.random.normal(gk, (cout,), jnp.float32),
            "beta": 0.05 * jax.random.normal(bk, (cout,), jnp.float32),
        }
    return params


if __name__ == "__main__":
    key = jax.random.PRNGKey(0)
    pkey, xkey = jax.random.split(key)

    filters = 4
    params = init_params(pkey, filters)

    # PyTorch-style NCDHW input: batch=2, channels=filters=4, D=H=W=8
    x = jax.random.normal(xkey, (2, filters, 8, 8, 8), dtype=jnp.float32)

    fwd = jax.jit(functools.partial(hourglass_forward, params=params))
    out = jax.block_until_ready(fwd(x))

    assert out.shape == (2, filters, 8, 8, 8), out.shape
    assert bool(jnp.all(jnp.isfinite(out)))
    print("KERNEL_OK")
</pallas_src>

<mosaic_0001>
module attributes {stable_mosaic.version = 11 : i64} {
  func.func @_matmul_kernel(%arg0: i32, %arg1: i32, %arg2: memref<1x4x108xbf16, #tpu.memory_space<vmem>>, %arg3: memref<1x108x1024xbf16, #tpu.memory_space<vmem>>, %arg4: memref<1x4x1024xf32, #tpu.memory_space<vmem>>) attributes {dimension_semantics = [#tpu.dimension_semantics<parallel>, #tpu.dimension_semantics<parallel>], iteration_bounds = array<i64: 1, 1>, scalar_prefetch = 0 : i64, scratch_operands = 0 : i64, tpu.core_type = #tpu.core_type<tc>, window_params = [{transform_indices = @transform_0, window_bounds = array<i64: 1, 4, 108>}, {transform_indices = @transform_1, window_bounds = array<i64: 1, 108, 1024>}, {transform_indices = @transform_2, window_bounds = array<i64: 1, 4, 1024>}]} {
    %c0 = arith.constant 0 : index
    %c0_0 = arith.constant 0 : index
    %c0_1 = arith.constant 0 : index
    %0 = vector.load %arg2[%c0, %c0_0, %c0_1] : memref<1x4x108xbf16, #tpu.memory_space<vmem>>, vector<1x4x108xbf16>
    %1 = vector.shape_cast %0 : vector<1x4x108xbf16> to vector<4x108xbf16>
    %c0_2 = arith.constant 0 : index
    %c0_3 = arith.constant 0 : index
    %c0_4 = arith.constant 0 : index
    %2 = vector.load %arg3[%c0_2, %c0_3, %c0_4] : memref<1x108x1024xbf16, #tpu.memory_space<vmem>>, vector<1x108x1024xbf16>
    %3 = vector.shape_cast %2 : vector<1x108x1024xbf16> to vector<108x1024xbf16>
    %cst = arith.constant dense<0.000000e+00> : vector<4x1024xf32>
    %4 = tpu.matmul %1, %3, %cst {dimension_numbers = #tpu.dot_dimension_numbers<[1], [0], [0], [1], [0, 0, 1, 1], [], []>} : vector<4x108xbf16>, vector<108x1024xbf16>, vector<4x1024xf32> -> vector<4x1024xf32>
    %c0_5 = arith.constant 0 : index
    %c0_6 = arith.constant 0 : index
    %c0_7 = arith.constant 0 : index
    %5 = vector.load %arg4[%c0_5, %c0_6, %c0_7] : memref<1x4x1024xf32, #tpu.memory_space<vmem>>, vector<1x4x1024xf32>
    %6 = vector.shape_cast %5 : vector<1x4x1024xf32> to vector<4x1024xf32>
    %7 = vector.shape_cast %4 : vector<4x1024xf32> to vector<1x4x1024xf32>
    tpu.vector_store %arg4[%c0_5, %c0_6, %c0_7], %7 {strides = array<i32>} : memref<1x4x1024xf32, #tpu.memory_space<vmem>>, vector<1x4x1024xf32>,
    return
  }
  func.func @transform_0(%arg0: i32, %arg1: i32) -> (i32, i32, i32) {
    %c0_i32 = arith.constant 0 : i32
    %c0_i32_0 = arith.constant 0 : i32
    %c0_i32_1 = arith.constant 0 : i32
    return %arg0, %c0_i32, %c0_i32_0 : i32, i32, i32
  }
  func.func @transform_1(%arg0: i32, %arg1: i32) -> (i32, i32, i32) {
    %c0_i32 = arith.constant 0 : i32
    %c0_i32_0 = arith.constant 0 : i32
    return %arg0, %c0_i32, %arg1 : i32, i32, i32
  }
  func.func @transform_2(%arg0: i32, %arg1: i32) -> (i32, i32, i32) {
    %c0_i32 = arith.constant 0 : i32
    %c0_i32_0 = arith.constant 0 : i32
    return %arg0, %c0_i32, %arg1 : i32, i32, i32
  }
}

module attributes {stable_mosaic.version = 11 : i64} {
  func.func @_bn_act_kernel(%arg0: i32, %arg1: memref<4x1024xf32, #tpu.memory_space<vmem>>, %arg2: memref<4x1xf32, #tpu.memory_space<vmem>>, %arg3: memref<4x1xf32, #tpu.memory_space<vmem>>, %arg4: memref<4x1024xf32, #tpu.memory_space<vmem>>) attributes {dimension_semantics = [#tpu.dimension_semantics<parallel>], iteration_bounds = array<i64: 1>, scalar_prefetch = 0 : i64, scratch_operands = 0 : i64, tpu.core_type = #tpu.core_type<tc>, window_params = [{transform_indices = @transform_0, window_bounds = array<i64: 4, 1024>}, {pipeline_mode = #tpu.pipeline_mode<synchronous>, transform_indices = @transform_1, window_bounds = array<i64: 4, 1>}, {pipeline_mode = #tpu.pipeline_mode<synchronous>, transform_indices = @transform_2, window_bounds = array<i64: 4, 1>}, {transform_indices = @transform_3, window_bounds = array<i64: 4, 1024>}]} {
    %c0 = arith.constant 0 : index
    %c0_0 = arith.constant 0 : index
    %0 = vector.load %arg1[%c0, %c0_0] : memref<4x1024xf32, #tpu.memory_space<vmem>>, vector<4x1024xf32>
    %c0_1 = arith.constant 0 : index
    %c0_2 = arith.constant 0 : index
    %1 = vector.load %arg2[%c0_1, %c0_2] : memref<4x1xf32, #tpu.memory_space<vmem>>, vector<4x1xf32>
    %2 = vector.broadcast %1 : vector<4x1xf32> to vector<4x1024xf32>
    %3 = arith.mulf %0, %2 : vector<4x1024xf32>
    %c0_3 = arith.constant 0 : index
    %c0_4 = arith.constant 0 : index
    %4 = vector.load %arg3[%c0_3, %c0_4] : memref<4x1xf32, #tpu.memory_space<vmem>>, vector<4x1xf32>
    %5 = vector.broadcast %4 : vector<4x1xf32> to vector<4x1024xf32>
    %6 = arith.addf %3, %5 : vector<4x1024xf32>
    %cst = arith.constant 0.000000e+00 : f32
    %7 = vector.broadcast %cst : f32 to vector<4x1024xf32>
    %8 = arith.cmpf oge, %6, %7 : vector<4x1024xf32>
    %cst_5 = arith.constant 2.000000e-01 : f32
    %9 = vector.broadcast %cst_5 : f32 to vector<4x1024xf32>
    %10 = arith.mulf %9, %6 : vector<4x1024xf32>
    %11 = arith.select %8, %6, %10 : vector<4x1024xi1>, vector<4x1024xf32>
    %c0_6 = arith.constant 0 : index
    %c0_7 = arith.constant 0 : index
    %12 = vector.load %arg4[%c0_6, %c0_7] : memref<4x1024xf32, #tpu.memory_space<vmem>>, vector<4x1024xf32>
    tpu.vector_store %arg4[%c0_6, %c0_7], %11 {strides = array<i32>} : memref<4x1024xf32, #tpu.memory_space<vmem>>, vector<4x1024xf32>,
    return
  }
  func.func @transform_0(%arg0: i32) -> (i32, i32) {
    %c0_i32 = arith.constant 0 : i32
    %c0_i32_0 = arith.constant 0 : i32
    return %c0_i32, %arg0 : i32, i32
  }
  func.func @transform_1(%arg0: i32) -> (i32, i32) {
    %c0_i32 = arith.constant 0 : i32
    %c0_i32_0 = arith.constant 0 : i32
    %c0_i32_1 = arith.constant 0 : i32
    return %c0_i32, %c0_i32_0 : i32, i32
  }
  func.func @transform_2(%arg0: i32) -> (i32, i32) {
    %c0_i32 = arith.constant 0 : i32
    %c0_i32_0 = arith.constant 0 : i32
    %c0_i32_1 = arith.constant 0 : i32
    return %c0_i32, %c0_i32_0 : i32, i32
  }
  func.func @transform_3(%arg0: i32) -> (i32, i32) {
    %c0_i32 = arith.constant 0 : i32
    %c0_i32_0 = arith.constant 0 : i32
    return %c0_i32, %arg0 : i32, i32
  }
}

module attributes {stable_mosaic.version = 11 : i64} {
  func.func @_matmul_kernel(%arg0: i32, %arg1: i32, %arg2: memref<1x8x108xbf16, #tpu.memory_space<vmem>>, %arg3: memref<1x108x128xbf16, #tpu.memory_space<vmem>>, %arg4: memref<1x8x128xf32, #tpu.memory_space<vmem>>) attributes {dimension_semantics = [#tpu.dimension_semantics<parallel>, #tpu.dimension_semantics<parallel>], iteration_bounds = array<i64: 1, 1>, scalar_prefetch = 0 : i64, scratch_operands = 0 : i64, tpu.core_type = #tpu.core_type<tc>, window_params = [{transform_indices = @transform_0, window_bounds = array<i64: 1, 8, 108>}, {transform_indices = @transform_1, window_bounds = array<i64: 1, 108, 128>}, {transform_indices = @transform_2, window_bounds = array<i64: 1, 8, 128>}]} {
    %c0 = arith.constant 0 : index
    %c0_0 = arith.constant 0 : index
    %c0_1 = arith.constant 0 : index
    %0 = vector.load %arg2[%c0, %c0_0, %c0_1] : memref<1x8x108xbf16, #tpu.memory_space<vmem>>, vector<1x8x108xbf16>
    %1 = vector.shape_cast %0 : vector<1x8x108xbf16> to vector<8x108xbf16>
    %c0_2 = arith.constant 0 : index
    %c0_3 = arith.constant 0 : index
    %c0_4 = arith.constant 0 : index
    %2 = vector.load %arg3[%c0_2, %c0_3, %c0_4] : memref<1x108x128xbf16, #tpu.memory_space<vmem>>, vector<1x108x128xbf16>
    %3 = vector.shape_cast %2 : vector<1x108x128xbf16> to vector<108x128xbf16>
    %cst = arith.constant dense<0.000000e+00> : vector<8x128xf32>
    %4 = tpu.matmul %1, %3, %cst {dimension_numbers = #tpu.dot_dimension_numbers<[1], [0], [0], [1], [0, 0, 1, 1], [], []>} : vector<8x108xbf16>, vector<108x128xbf16>, vector<8x128xf32> -> vector<8x128xf32>
    %c0_5 = arith.constant 0 : index
    %c0_6 = arith.constant 0 : index
    %c0_7 = arith.constant 0 : index
    %5 = vector.load %arg4[%c0_5, %c0_6, %c0_7] : memref<1x8x128xf32, #tpu.memory_space<vmem>>, vector<1x8x128xf32>
    %6 = vector.shape_cast %5 : vector<1x8x128xf32> to vector<8x128xf32>
    %7 = vector.shape_cast %4 : vector<8x128xf32> to vector<1x8x128xf32>
    tpu.vector_store %arg4[%c0_5, %c0_6, %c0_7], %7 {strides = array<i32>} : memref<1x8x128xf32, #tpu.memory_space<vmem>>, vector<1x8x128xf32>,
    return
  }
  func.func @transform_0(%arg0: i32, %arg1: i32) -> (i32, i32, i32) {
    %c0_i32 = arith.constant 0 : i32
    %c0_i32_0 = arith.constant 0 : i32
    %c0_i32_1 = arith.constant 0 : i32
    return %arg0, %c0_i32, %c0_i32_0 : i32, i32, i32
  }
  func.func @transform_1(%arg0: i32, %arg1: i32) -> (i32, i32, i32) {
    %c0_i32 = arith.constant 0 : i32
    %c0_i32_0 = arith.constant 0 : i32
    return %arg0, %c0_i32, %arg1 : i32, i32, i32
  }
  func.func @transform_2(%arg0: i32, %arg1: i32) -> (i32, i32, i32) {
    %c0_i32 = arith.constant 0 : i32
    %c0_i32_0 = arith.constant 0 : i32
    return %arg0, %c0_i32, %arg1 : i32, i32, i32
  }
}

module attributes {stable_mosaic.version = 11 : i64} {
  func.func @_bn_act_kernel(%arg0: i32, %arg1: memref<8x128xf32, #tpu.memory_space<vmem>>, %arg2: memref<8x1xf32, #tpu.memory_space<vmem>>, %arg3: memref<8x1xf32, #tpu.memory_space<vmem>>, %arg4: memref<8x128xf32, #tpu.memory_space<vmem>>) attributes {dimension_semantics = [#tpu.dimension_semantics<parallel>], iteration_bounds = array<i64: 1>, scalar_prefetch = 0 : i64, scratch_operands = 0 : i64, tpu.core_type = #tpu.core_type<tc>, window_params = [{transform_indices = @transform_0, window_bounds = array<i64: 8, 128>}, {pipeline_mode = #tpu.pipeline_mode<synchronous>, transform_indices = @transform_1, window_bounds = array<i64: 8, 1>}, {pipeline_mode = #tpu.pipeline_mode<synchronous>, transform_indices = @transform_2, window_bounds = array<i64: 8, 1>}, {transform_indices = @transform_3, window_bounds = array<i64: 8, 128>}]} {
    %c0 = arith.constant 0 : index
    %c0_0 = arith.constant 0 : index
    %0 = vector.load %arg1[%c0, %c0_0] : memref<8x128xf32, #tpu.memory_space<vmem>>, vector<8x128xf32>
    %c0_1 = arith.constant 0 : index
    %c0_2 = arith.constant 0 : index
    %1 = vector.load %arg2[%c0_1, %c0_2] : memref<8x1xf32, #tpu.memory_space<vmem>>, vector<8x1xf32>
    %2 = vector.broadcast %1 : vector<8x1xf32> to vector<8x128xf32>
    %3 = arith.mulf %0, %2 : vector<8x128xf32>
    %c0_3 = arith.constant 0 : index
    %c0_4 = arith.constant 0 : index
    %4 = vector.load %arg3[%c0_3, %c0_4] : memref<8x1xf32, #tpu.memory_space<vmem>>, vector<8x1xf32>
    %5 = vector.broadcast %4 : vector<8x1xf32> to vector<8x128xf32>
    %6 = arith.addf %3, %5 : vector<8x128xf32>
    %cst = arith.constant 0.000000e+00 : f32
    %7 = vector.broadcast %cst : f32 to vector<8x128xf32>
    %8 = arith.cmpf oge, %6, %7 : vector<8x128xf32>
    %cst_5 = arith.constant 2.000000e-01 : f32
    %9 = vector.broadcast %cst_5 : f32 to vector<8x128xf32>
    %10 = arith.mulf %9, %6 : vector<8x128xf32>
    %11 = arith.select %8, %6, %10 : vector<8x128xi1>, vector<8x128xf32>
    %c0_6 = arith.constant 0 : index
    %c0_7 = arith.constant 0 : index
    %12 = vector.load %arg4[%c0_6, %c0_7] : memref<8x128xf32, #tpu.memory_space<vmem>>, vector<8x128xf32>
    tpu.vector_store %arg4[%c0_6, %c0_7], %11 {strides = array<i32>} : memref<8x128xf32, #tpu.memory_space<vmem>>, vector<8x128xf32>,
    return
  }
  func.func @transform_0(%arg0: i32) -> (i32, i32) {
    %c0_i32 = arith.constant 0 : i32
    %c0_i32_0 = arith.constant 0 : i32
    return %c0_i32, %arg0 : i32, i32
  }
  func.func @transform_1(%arg0: i32) -> (i32, i32) {
    %c0_i32 = arith.constant 0 : i32
    %c0_i32_0 = arith.constant 0 : i32
    %c0_i32_1 = arith.constant 0 : i32
    return %c0_i32, %c0_i32_0 : i32, i32
  }
  func.func @transform_2(%arg0: i32) -> (i32, i32) {
    %c0_i32 = arith.constant 0 : i32
    %c0_i32_0 = arith.constant 0 : i32
    %c0_i32_1 = arith.constant 0 : i32
    return %c0_i32, %c0_i32_0 : i32, i32
  }
  func.func @transform_3(%arg0: i32) -> (i32, i32) {
    %c0_i32 = arith.constant 0 : i32
    %c0_i32_0 = arith.constant 0 : i32
    return %c0_i32, %arg0 : i32, i32
  }
}

module attributes {stable_mosaic.version = 11 : i64} {
  func.func @_matmul_kernel(%arg0: i32, %arg1: i32, %arg2: memref<1x8x216xbf16, #tpu.memory_space<vmem>>, %arg3: memref<1x216x128xbf16, #tpu.memory_space<vmem>>, %arg4: memref<1x8x128xf32, #tpu.memory_space<vmem>>) attributes {dimension_semantics = [#tpu.dimension_semantics<parallel>, #tpu.dimension_semantics<parallel>], iteration_bounds = array<i64: 1, 1>, scalar_prefetch = 0 : i64, scratch_operands = 0 : i64, tpu.core_type = #tpu.core_type<tc>, window_params = [{transform_indices = @transform_0, window_bounds = array<i64: 1, 8, 216>}, {transform_indices = @transform_1, window_bounds = array<i64: 1, 216, 128>}, {transform_indices = @transform_2, window_bounds = array<i64: 1, 8, 128>}]} {
    %c0 = arith.constant 0 : index
    %c0_0 = arith.constant 0 : index
    %c0_1 = arith.constant 0 : index
    %0 = vector.load %arg2[%c0, %c0_0, %c0_1] : memref<1x8x216xbf16, #tpu.memory_space<vmem>>, vector<1x8x216xbf16>
    %1 = vector.shape_cast %0 : vector<1x8x216xbf16> to vector<8x216xbf16>
    %c0_2 = arith.constant 0 : index
    %c0_3 = arith.constant 0 : index
    %c0_4 = arith.constant 0 : index
    %2 = vector.load %arg3[%c0_2, %c0_3, %c0_4] : memref<1x216x128xbf16, #tpu.memory_space<vmem>>, vector<1x216x128xbf16>
    %3 = vector.shape_cast %2 : vector<1x216x128xbf16> to vector<216x128xbf16>
    %cst = arith.constant dense<0.000000e+00> : vector<8x128xf32>
    %4 = tpu.matmul %1, %3, %cst {dimension_numbers = #tpu.dot_dimension_numbers<[1], [0], [0], [1], [0, 0, 1, 1], [], []>} : vector<8x216xbf16>, vector<216x128xbf16>, vector<8x128xf32> -> vector<8x128xf32>
    %c0_5 = arith.constant 0 : index
    %c0_6 = arith.constant 0 : index
    %c0_7 = arith.constant 0 : index
    %5 = vector.load %arg4[%c0_5, %c0_6, %c0_7] : memref<1x8x128xf32, #tpu.memory_space<vmem>>, vector<1x8x128xf32>
    %6 = vector.shape_cast %5 : vector<1x8x128xf32> to vector<8x128xf32>
    %7 = vector.shape_cast %4 : vector<8x128xf32> to vector<1x8x128xf32>
    tpu.vector_store %arg4[%c0_5, %c0_6, %c0_7], %7 {strides = array<i32>} : memref<1x8x128xf32, #tpu.memory_space<vmem>>, vector<1x8x128xf32>,
    return
  }
  func.func @transform_0(%arg0: i32, %arg1: i32) -> (i32, i32, i32) {
    %c0_i32 = arith.constant 0 : i32
    %c0_i32_0 = arith.constant 0 : i32
    %c0_i32_1 = arith.constant 0 : i32
    return %arg0, %c0_i32, %c0_i32_0 : i32, i32, i32
  }
  func.func @transform_1(%arg0: i32, %arg1: i32) -> (i32, i32, i32) {
    %c0_i32 = arith.constant 0 : i32
    %c0_i32_0 = arith.constant 0 : i32
    return %arg0, %c0_i32, %arg1 : i32, i32, i32
  }
  func.func @transform_2(%arg0: i32, %arg1: i32) -> (i32, i32, i32) {
    %c0_i32 = arith.constant 0 : i32
    %c0_i32_0 = arith.constant 0 : i32
    return %arg0, %c0_i32, %arg1 : i32, i32, i32
  }
}

module attributes {stable_mosaic.version = 11 : i64} {
  func.func @_matmul_kernel(%arg0: i32, %arg1: i32, %arg2: memref<1x8x216xbf16, #tpu.memory_space<vmem>>, %arg3: memref<1x216x16xbf16, #tpu.memory_space<vmem>>, %arg4: memref<1x8x16xf32, #tpu.memory_space<vmem>>) attributes {dimension_semantics = [#tpu.dimension_semantics<parallel>, #tpu.dimension_semantics<parallel>], iteration_bounds = array<i64: 1, 1>, scalar_prefetch = 0 : i64, scratch_operands = 0 : i64, tpu.core_type = #tpu.core_type<tc>, window_params = [{transform_indices = @transform_0, window_bounds = array<i64: 1, 8, 216>}, {transform_indices = @transform_1, window_bounds = array<i64: 1, 216, 16>}, {transform_indices = @transform_2, window_bounds = array<i64: 1, 8, 16>}]} {
    %c0 = arith.constant 0 : index
    %c0_0 = arith.constant 0 : index
    %c0_1 = arith.constant 0 : index
    %0 = vector.load %arg2[%c0, %c0_0, %c0_1] : memref<1x8x216xbf16, #tpu.memory_space<vmem>>, vector<1x8x216xbf16>
    %1 = vector.shape_cast %0 : vector<1x8x216xbf16> to vector<8x216xbf16>
    %c0_2 = arith.constant 0 : index
    %c0_3 = arith.constant 0 : index
    %c0_4 = arith.constant 0 : index
    %2 = vector.load %arg3[%c0_2, %c0_3, %c0_4] : memref<1x216x16xbf16, #tpu.memory_space<vmem>>, vector<1x216x16xbf16>
    %3 = vector.shape_cast %2 : vector<1x216x16xbf16> to vector<216x16xbf16>
    %cst = arith.constant dense<0.000000e+00> : vector<8x16xf32>
    %4 = tpu.matmul %1, %3, %cst {dimension_numbers = #tpu.dot_dimension_numbers<[1], [0], [0], [1], [0, 0, 1, 1], [], []>} : vector<8x216xbf16>, vector<216x16xbf16>, vector<8x16xf32> -> vector<8x16xf32>
    %c0_5 = arith.constant 0 : index
    %c0_6 = arith.constant 0 : index
    %c0_7 = arith.constant 0 : index
    %5 = vector.load %arg4[%c0_5, %c0_6, %c0_7] : memref<1x8x16xf32, #tpu.memory_space<vmem>>, vector<1x8x16xf32>
    %6 = vector.shape_cast %5 : vector<1x8x16xf32> to vector<8x16xf32>
    %7 = vector.shape_cast %4 : vector<8x16xf32> to vector<1x8x16xf32>
    tpu.vector_store %arg4[%c0_5, %c0_6, %c0_7], %7 {strides = array<i32>} : memref<1x8x16xf32, #tpu.memory_space<vmem>>, vector<1x8x16xf32>,
    return
  }
  func.func @transform_0(%arg0: i32, %arg1: i32) -> (i32, i32, i32) {
    %c0_i32 = arith.constant 0 : i32
    %c0_i32_0 = arith.constant 0 : i32
    %c0_i32_1 = arith.constant 0 : i32
    return %arg0, %c0_i32, %c0_i32_0 : i32, i32, i32
  }
  func.func @transform_1(%arg0: i32, %arg1: i32) -> (i32, i32, i32) {
    %c0_i32 = arith.constant 0 : i32
    %c0_i32_0 = arith.constant 0 : i32
    return %arg0, %c0_i32, %arg1 : i32, i32, i32
  }
  func.func @transform_2(%arg0: i32, %arg1: i32) -> (i32, i32, i32) {
    %c0_i32 = arith.constant 0 : i32
    %c0_i32_0 = arith.constant 0 : i32
    return %arg0, %c0_i32, %arg1 : i32, i32, i32
  }
}

module attributes {stable_mosaic.version = 11 : i64} {
  func.func @_bn_act_kernel(%arg0: i32, %arg1: memref<8x16xf32, #tpu.memory_space<vmem>>, %arg2: memref<8x1xf32, #tpu.memory_space<vmem>>, %arg3: memref<8x1xf32, #tpu.memory_space<vmem>>, %arg4: memref<8x16xf32, #tpu.memory_space<vmem>>) attributes {dimension_semantics = [#tpu.dimension_semantics<parallel>], iteration_bounds = array<i64: 1>, scalar_prefetch = 0 : i64, scratch_operands = 0 : i64, tpu.core_type = #tpu.core_type<tc>, window_params = [{transform_indices = @transform_0, window_bounds = array<i64: 8, 16>}, {pipeline_mode = #tpu.pipeline_mode<synchronous>, transform_indices = @transform_1, window_bounds = array<i64: 8, 1>}, {pipeline_mode = #tpu.pipeline_mode<synchronous>, transform_indices = @transform_2, window_bounds = array<i64: 8, 1>}, {transform_indices = @transform_3, window_bounds = array<i64: 8, 16>}]} {
    %c0 = arith.constant 0 : index
    %c0_0 = arith.constant 0 : index
    %0 = vector.load %arg1[%c0, %c0_0] : memref<8x16xf32, #tpu.memory_space<vmem>>, vector<8x16xf32>
    %c0_1 = arith.constant 0 : index
    %c0_2 = arith.constant 0 : index
    %1 = vector.load %arg2[%c0_1, %c0_2] : memref<8x1xf32, #tpu.memory_space<vmem>>, vector<8x1xf32>
    %2 = vector.broadcast %1 : vector<8x1xf32> to vector<8x16xf32>
    %3 = arith.mulf %0, %2 : vector<8x16xf32>
    %c0_3 = arith.constant 0 : index
    %c0_4 = arith.constant 0 : index
    %4 = vector.load %arg3[%c0_3, %c0_4] : memref<8x1xf32, #tpu.memory_space<vmem>>, vector<8x1xf32>
    %5 = vector.broadcast %4 : vector<8x1xf32> to vector<8x16xf32>
    %6 = arith.addf %3, %5 : vector<8x16xf32>
    %cst = arith.constant 0.000000e+00 : f32
    %7 = vector.broadcast %cst : f32 to vector<8x16xf32>
    %8 = arith.cmpf oge, %6, %7 : vector<8x16xf32>
    %cst_5 = arith.constant 2.000000e-01 : f32
    %9 = vector.broadcast %cst_5 : f32 to vector<8x16xf32>
    %10 = arith.mulf %9, %6 : vector<8x16xf32>
    %11 = arith.select %8, %6, %10 : vector<8x16xi1>, vector<8x16xf32>
    %c0_6 = arith.constant 0 : index
    %c0_7 = arith.constant 0 : index
    %12 = vector.load %arg4[%c0_6, %c0_7] : memref<8x16xf32, #tpu.memory_space<vmem>>, vector<8x16xf32>
    tpu.vector_store %arg4[%c0_6, %c0_7], %11 {strides = array<i32>} : memref<8x16xf32, #tpu.memory_space<vmem>>, vector<8x16xf32>,
    return
  }
  func.func @transform_0(%arg0: i32) -> (i32, i32) {
    %c0_i32 = arith.constant 0 : i32
    %c0_i32_0 = arith.constant 0 : i32
    return %c0_i32, %arg0 : i32, i32
  }
  func.func @transform_1(%arg0: i32) -> (i32, i32) {
    %c0_i32 = arith.constant 0 : i32
    %c0_i32_0 = arith.constant 0 : i32
    %c0_i32_1 = arith.constant 0 : i32
    return %c0_i32, %c0_i32_0 : i32, i32
  }
  func.func @transform_2(%arg0: i32) -> (i32, i32) {
    %c0_i32 = arith.constant 0 : i32
    %c0_i32_0 = arith.constant 0 : i32
    %c0_i32_1 = arith.constant 0 : i32
    return %c0_i32, %c0_i32_0 : i32, i32
  }
  func.func @transform_3(%arg0: i32) -> (i32, i32) {
    %c0_i32 = arith.constant 0 : i32
    %c0_i32_0 = arith.constant 0 : i32
    return %c0_i32, %arg0 : i32, i32
  }
}

module attributes {stable_mosaic.version = 11 : i64} {
  func.func @_matmul_kernel(%arg0: i32, %arg1: i32, %arg2: memref<1x8x64xbf16, #tpu.memory_space<vmem>>, %arg3: memref<1x64x16xbf16, #tpu.memory_space<vmem>>, %arg4: memref<1x8x16xf32, #tpu.memory_space<vmem>>) attributes {dimension_semantics = [#tpu.dimension_semantics<parallel>, #tpu.dimension_semantics<parallel>], iteration_bounds = array<i64: 8, 1>, scalar_prefetch = 0 : i64, scratch_operands = 0 : i64, tpu.core_type = #tpu.core_type<tc>, window_params = [{transform_indices = @transform_0, window_bounds = array<i64: 1, 8, 64>}, {transform_indices = @transform_1, window_bounds = array<i64: 1, 64, 16>}, {transform_indices = @transform_2, window_bounds = array<i64: 1, 8, 16>}]} {
    %c0 = arith.constant 0 : index
    %c0_0 = arith.constant 0 : index
    %c0_1 = arith.constant 0 : index
    %0 = vector.load %arg2[%c0, %c0_0, %c0_1] : memref<1x8x64xbf16, #tpu.memory_space<vmem>>, vector<1x8x64xbf16>
    %1 = vector.shape_cast %0 : vector<1x8x64xbf16> to vector<8x64xbf16>
    %c0_2 = arith.constant 0 : index
    %c0_3 = arith.constant 0 : index
    %c0_4 = arith.constant 0 : index
    %2 = vector.load %arg3[%c0_2, %c0_3, %c0_4] : memref<1x64x16xbf16, #tpu.memory_space<vmem>>, vector<1x64x16xbf16>
    %3 = vector.shape_cast %2 : vector<1x64x16xbf16> to vector<64x16xbf16>
    %cst = arith.constant dense<0.000000e+00> : vector<8x16xf32>
    %4 = tpu.matmul %1, %3, %cst {dimension_numbers = #tpu.dot_dimension_numbers<[1], [0], [0], [1], [0, 0, 1, 1], [], []>} : vector<8x64xbf16>, vector<64x16xbf16>, vector<8x16xf32> -> vector<8x16xf32>
    %c0_5 = arith.constant 0 : index
    %c0_6 = arith.constant 0 : index
    %c0_7 = arith.constant 0 : index
    %5 = vector.load %arg4[%c0_5, %c0_6, %c0_7] : memref<1x8x16xf32, #tpu.memory_space<vmem>>, vector<1x8x16xf32>
    %6 = vector.shape_cast %5 : vector<1x8x16xf32> to vector<8x16xf32>
    %7 = vector.shape_cast %4 : vector<8x16xf32> to vector<1x8x16xf32>
    tpu.vector_store %arg4[%c0_5, %c0_6, %c0_7], %7 {strides = array<i32>} : memref<1x8x16xf32, #tpu.memory_space<vmem>>, vector<1x8x16xf32>,
    return
  }
  func.func @transform_0(%arg0: i32, %arg1: i32) -> (i32, i32, i32) {
    %c0_i32 = arith.constant 0 : i32
    %c0_i32_0 = arith.constant 0 : i32
    %c0_i32_1 = arith.constant 0 : i32
    return %arg0, %c0_i32, %c0_i32_0 : i32, i32, i32
  }
  func.func @transform_1(%arg0: i32, %arg1: i32) -> (i32, i32, i32) {
    %c0_i32 = arith.constant 0 : i32
    %c0_i32_0 = arith.constant 0 : i32
    return %arg0, %c0_i32, %arg1 : i32, i32, i32
  }
  func.func @transform_2(%arg0: i32, %arg1: i32) -> (i32, i32, i32) {
    %c0_i32 = arith.constant 0 : i32
    %c0_i32_0 = arith.constant 0 : i32
    return %arg0, %c0_i32, %arg1 : i32, i32, i32
  }
}

module attributes {stable_mosaic.version = 11 : i64} {
  func.func @_bn_act_res_kernel(%arg0: i32, %arg1: memref<8x128xf32, #tpu.memory_space<vmem>>, %arg2: memref<8x1xf32, #tpu.memory_space<vmem>>, %arg3: memref<8x1xf32, #tpu.memory_space<vmem>>, %arg4: memref<8x128xf32, #tpu.memory_space<vmem>>, %arg5: memref<8x128xf32, #tpu.memory_space<vmem>>) attributes {dimension_semantics = [#tpu.dimension_semantics<parallel>], iteration_bounds = array<i64: 1>, scalar_prefetch = 0 : i64, scratch_operands = 0 : i64, tpu.core_type = #tpu.core_type<tc>, window_params = [{transform_indices = @transform_0, window_bounds = array<i64: 8, 128>}, {pipeline_mode = #tpu.pipeline_mode<synchronous>, transform_indices = @transform_1, window_bounds = array<i64: 8, 1>}, {pipeline_mode = #tpu.pipeline_mode<synchronous>, transform_indices = @transform_2, window_bounds = array<i64: 8, 1>}, {transform_indices = @transform_3, window_bounds = array<i64: 8, 128>}, {transform_indices = @transform_4, window_bounds = array<i64: 8, 128>}]} {
    %c0 = arith.constant 0 : index
    %c0_0 = arith.constant 0 : index
    %0 = vector.load %arg1[%c0, %c0_0] : memref<8x128xf32, #tpu.memory_space<vmem>>, vector<8x128xf32>
    %c0_1 = arith.constant 0 : index
    %c0_2 = arith.constant 0 : index
    %1 = vector.load %arg2[%c0_1, %c0_2] : memref<8x1xf32, #tpu.memory_space<vmem>>, vector<8x1xf32>
    %2 = vector.broadcast %1 : vector<8x1xf32> to vector<8x128xf32>
    %3 = arith.mulf %0, %2 : vector<8x128xf32>
    %c0_3 = arith.constant 0 : index
    %c0_4 = arith.constant 0 : index
    %4 = vector.load %arg3[%c0_3, %c0_4] : memref<8x1xf32, #tpu.memory_space<vmem>>, vector<8x1xf32>
    %5 = vector.broadcast %4 : vector<8x1xf32> to vector<8x128xf32>
    %6 = arith.addf %3, %5 : vector<8x128xf32>
    %cst = arith.constant 0.000000e+00 : f32
    %7 = vector.broadcast %cst : f32 to vector<8x128xf32>
    %8 = arith.cmpf oge, %6, %7 : vector<8x128xf32>
    %cst_5 = arith.constant 2.000000e-01 : f32
    %9 = vector.broadcast %cst_5 : f32 to vector<8x128xf32>
    %10 = arith.mulf %9, %6 : vector<8x128xf32>
    %11 = arith.select %8, %6, %10 : vector<8x128xi1>, vector<8x128xf32>
    %c0_6 = arith.constant 0 : index
    %c0_7 = arith.constant 0 : index
    %12 = vector.load %arg4[%c0_6, %c0_7] : memref<8x128xf32, #tpu.memory_space<vmem>>, vector<8x128xf32>
    %13 = arith.addf %11, %12 : vector<8x128xf32>
    %c0_8 = arith.constant 0 : index
    %c0_9 = arith.constant 0 : index
    %14 = vector.load %arg5[%c0_8, %c0_9] : memref<8x128xf32, #tpu.memory_space<vmem>>, vector<8x128xf32>
    tpu.vector_store %arg5[%c0_8, %c0_9], %13 {strides = array<i32>} : memref<8x128xf32, #tpu.memory_space<vmem>>, vector<8x128xf32>,
    return
  }
  func.func @transform_0(%arg0: i32) -> (i32, i32) {
    %c0_i32 = arith.constant 0 : i32
    %c0_i32_0 = arith.constant 0 : i32
    return %c0_i32, %arg0 : i32, i32
  }
  func.func @transform_1(%arg0: i32) -> (i32, i32) {
    %c0_i32 = arith.constant 0 : i32
    %c0_i32_0 = arith.constant 0 : i32
    %c0_i32_1 = arith.constant 0 : i32
    return %c0_i32, %c0_i32_0 : i32, i32
  }
  func.func @transform_2(%arg0: i32) -> (i32, i32) {
    %c0_i32 = arith.constant 0 : i32
    %c0_i32_0 = arith.constant 0 : i32
    %c0_i32_1 = arith.constant 0 : i32
    return %c0_i32, %c0_i32_0 : i32, i32
  }
  func.func @transform_3(%arg0: i32) -> (i32, i32) {
    %c0_i32 = arith.constant 0 : i32
    %c0_i32_0 = arith.constant 0 : i32
    return %c0_i32, %arg0 : i32, i32
  }
  func.func @transform_4(%arg0: i32) -> (i32, i32) {
    %c0_i32 = arith.constant 0 : i32
    %c0_i32_0 = arith.constant 0 : i32
    return %c0_i32, %arg0 : i32, i32
  }
}

module attributes {stable_mosaic.version = 11 : i64} {
  func.func @_matmul_kernel(%arg0: i32, %arg1: i32, %arg2: memref<1x4x64xbf16, #tpu.memory_space<vmem>>, %arg3: memref<1x64x128xbf16, #tpu.memory_space<vmem>>, %arg4: memref<1x4x128xf32, #tpu.memory_space<vmem>>) attributes {dimension_semantics = [#tpu.dimension_semantics<parallel>, #tpu.dimension_semantics<parallel>], iteration_bounds = array<i64: 8, 1>, scalar_prefetch = 0 : i64, scratch_operands = 0 : i64, tpu.core_type = #tpu.core_type<tc>, window_params = [{transform_indices = @transform_0, window_bounds = array<i64: 1, 4, 64>}, {transform_indices = @transform_1, window_bounds = array<i64: 1, 64, 128>}, {transform_indices = @transform_2, window_bounds = array<i64: 1, 4, 128>}]} {
    %c0 = arith.constant 0 : index
    %c0_0 = arith.constant 0 : index
    %c0_1 = arith.constant 0 : index
    %0 = vector.load %arg2[%c0, %c0_0, %c0_1] : memref<1x4x64xbf16, #tpu.memory_space<vmem>>, vector<1x4x64xbf16>
    %1 = vector.shape_cast %0 : vector<1x4x64xbf16> to vector<4x64xbf16>
    %c0_2 = arith.constant 0 : index
    %c0_3 = arith.constant 0 : index
    %c0_4 = arith.constant 0 : index
    %2 = vector.load %arg3[%c0_2, %c0_3, %c0_4] : memref<1x64x128xbf16, #tpu.memory_space<vmem>>, vector<1x64x128xbf16>
    %3 = vector.shape_cast %2 : vector<1x64x128xbf16> to vector<64x128xbf16>
    %cst = arith.constant dense<0.000000e+00> : vector<4x128xf32>
    %4 = tpu.matmul %1, %3, %cst {dimension_numbers = #tpu.dot_dimension_numbers<[1], [0], [0], [1], [0, 0, 1, 1], [], []>} : vector<4x64xbf16>, vector<64x128xbf16>, vector<4x128xf32> -> vector<4x128xf32>
    %c0_5 = arith.constant 0 : index
    %c0_6 = arith.constant 0 : index
    %c0_7 = arith.constant 0 : index
    %5 = vector.load %arg4[%c0_5, %c0_6, %c0_7] : memref<1x4x128xf32, #tpu.memory_space<vmem>>, vector<1x4x128xf32>
    %6 = vector.shape_cast %5 : vector<1x4x128xf32> to vector<4x128xf32>
    %7 = vector.shape_cast %4 : vector<4x128xf32> to vector<1x4x128xf32>
    tpu.vector_store %arg4[%c0_5, %c0_6, %c0_7], %7 {strides = array<i32>} : memref<1x4x128xf32, #tpu.memory_space<vmem>>, vector<1x4x128xf32>,
    return
  }
  func.func @transform_0(%arg0: i32, %arg1: i32) -> (i32, i32, i32) {
    %c0_i32 = arith.constant 0 : i32
    %c0_i32_0 = arith.constant 0 : i32
    %c0_i32_1 = arith.constant 0 : i32
    return %arg0, %c0_i32, %c0_i32_0 : i32, i32, i32
  }
  func.func @transform_1(%arg0: i32, %arg1: i32) -> (i32, i32, i32) {
    %c0_i32 = arith.constant 0 : i32
    %c0_i32_0 = arith.constant 0 : i32
    return %arg0, %c0_i32, %arg1 : i32, i32, i32
  }
  func.func @transform_2(%arg0: i32, %arg1: i32) -> (i32, i32, i32) {
    %c0_i32 = arith.constant 0 : i32
    %c0_i32_0 = arith.constant 0 : i32
    return %arg0, %c0_i32, %arg1 : i32, i32, i32
  }
}

module attributes {stable_mosaic.version = 11 : i64} {
  func.func @_bn_act_res_kernel(%arg0: i32, %arg1: memref<4x1024xf32, #tpu.memory_space<vmem>>, %arg2: memref<4x1xf32, #tpu.memory_space<vmem>>, %arg3: memref<4x1xf32, #tpu.memory_space<vmem>>, %arg4: memref<4x1024xf32, #tpu.memory_space<vmem>>, %arg5: memref<4x1024xf32, #tpu.memory_space<vmem>>) attributes {dimension_semantics = [#tpu.dimension_semantics<parallel>], iteration_bounds = array<i64: 1>, scalar_prefetch = 0 : i64, scratch_operands = 0 : i64, tpu.core_type = #tpu.core_type<tc>, window_params = [{transform_indices = @transform_0, window_bounds = array<i64: 4, 1024>}, {pipeline_mode = #tpu.pipeline_mode<synchronous>, transform_indices = @transform_1, window_bounds = array<i64: 4, 1>}, {pipeline_mode = #tpu.pipeline_mode<synchronous>, transform_indices = @transform_2, window_bounds = array<i64: 4, 1>}, {transform_indices = @transform_3, window_bounds = array<i64: 4, 1024>}, {transform_indices = @transform_4, window_bounds = array<i64: 4, 1024>}]} {
    %c0 = arith.constant 0 : index
    %c0_0 = arith.constant 0 : index
    %0 = vector.load %arg1[%c0, %c0_0] : memref<4x1024xf32, #tpu.memory_space<vmem>>, vector<4x1024xf32>
    %c0_1 = arith.constant 0 : index
    %c0_2 = arith.constant 0 : index
    %1 = vector.load %arg2[%c0_1, %c0_2] : memref<4x1xf32, #tpu.memory_space<vmem>>, vector<4x1xf32>
    %2 = vector.broadcast %1 : vector<4x1xf32> to vector<4x1024xf32>
    %3 = arith.mulf %0, %2 : vector<4x1024xf32>
    %c0_3 = arith.constant 0 : index
    %c0_4 = arith.constant 0 : index
    %4 = vector.load %arg3[%c0_3, %c0_4] : memref<4x1xf32, #tpu.memory_space<vmem>>, vector<4x1xf32>
    %5 = vector.broadcast %4 : vector<4x1xf32> to vector<4x1024xf32>
    %6 = arith.addf %3, %5 : vector<4x1024xf32>
    %cst = arith.constant 0.000000e+00 : f32
    %7 = vector.broadcast %cst : f32 to vector<4x1024xf32>
    %8 = arith.cmpf oge, %6, %7 : vector<4x1024xf32>
    %cst_5 = arith.constant 2.000000e-01 : f32
    %9 = vector.broadcast %cst_5 : f32 to vector<4x1024xf32>
    %10 = arith.mulf %9, %6 : vector<4x1024xf32>
    %11 = arith.select %8, %6, %10 : vector<4x1024xi1>, vector<4x1024xf32>
    %c0_6 = arith.constant 0 : index
    %c0_7 = arith.constant 0 : index
    %12 = vector.load %arg4[%c0_6, %c0_7] : memref<4x1024xf32, #tpu.memory_space<vmem>>, vector<4x1024xf32>
    %13 = arith.addf %11, %12 : vector<4x1024xf32>
    %c0_8 = arith.constant 0 : index
    %c0_9 = arith.constant 0 : index
    %14 = vector.load %arg5[%c0_8, %c0_9] : memref<4x1024xf32, #tpu.memory_space<vmem>>, vector<4x1024xf32>
    tpu.vector_store %arg5[%c0_8, %c0_9], %13 {strides = array<i32>} : memref<4x1024xf32, #tpu.memory_space<vmem>>, vector<4x1024xf32>,
    return
  }
  func.func @transform_0(%arg0: i32) -> (i32, i32) {
    %c0_i32 = arith.constant 0 : i32
    %c0_i32_0 = arith.constant 0 : i32
    return %c0_i32, %arg0 : i32, i32
  }
  func.func @transform_1(%arg0: i32) -> (i32, i32) {
    %c0_i32 = arith.constant 0 : i32
    %c0_i32_0 = arith.constant 0 : i32
    %c0_i32_1 = arith.constant 0 : i32
    return %c0_i32, %c0_i32_0 : i32, i32
  }
  func.func @transform_2(%arg0: i32) -> (i32, i32) {
    %c0_i32 = arith.constant 0 : i32
    %c0_i32_0 = arith.constant 0 : i32
    %c0_i32_1 = arith.constant 0 : i32
    return %c0_i32, %c0_i32_0 : i32, i32
  }
  func.func @transform_3(%arg0: i32) -> (i32, i32) {
    %c0_i32 = arith.constant 0 : i32
    %c0_i32_0 = arith.constant 0 : i32
    return %c0_i32, %arg0 : i32, i32
  }
  func.func @transform_4(%arg0: i32) -> (i32, i32) {
    %c0_i32 = arith.constant 0 : i32
    %c0_i32_0 = arith.constant 0 : i32
    return %c0_i32, %arg0 : i32, i32
  }
}

</mosaic_0001>

<llo_original>
// kernel: hourglass_forward.16
$region0: #{hourglass_forward.16}
  #allocation0 [shape = 'u32[]', space=smem, size = 0x4, offset = 0x4, fixed_abs, tag = 'smem constant byte address 0x4 - core index']
  #allocation1 [shape = 'u32[144,128]{1,0:T(1,128)}', space=vmem, size = 0x12000, scoped, tag = 'internal scratch']
  %s0 = inlined_call_operand.vmem [shape: bf16[1,4,108], index: 0, kind: input, shape index: {}]
  %s1 = inlined_call_operand.vmem [shape: bf16[1,108,1024], index: 1, kind: input, shape index: {}]
  %s2 = inlined_call_operand.vmem [shape: f32[1,4,1024], index: 2, kind: output, shape index: {}]
  %s3 = sld [smem:[#allocation0]]
  $region18: #{hourglass_forward.16} parent=0
    _
  %s5 = ssub.s32 1, %s3
  %s6 = scalar_select 0, %s5, %s3
  // Predicated region
  $region2: #{hourglass_forward.16} parent=0 // pred_check
    _
  $region3: #{hourglass_forward.16} parent=0 // pred_check_branch
    %8 = sbr.rel (0) target = $region5
  $region4: #{hourglass_forward.16} parent=0 // pred_region
    _
  $region5: #{hourglass_forward.16} parent=0 // pred_fallthru
    _
  // Predicated region
  $region6: #{hourglass_forward.16} parent=0 // pred_check
    _
  $region7: #{hourglass_forward.16} parent=0 // pred_check_branch
    %10 = sbr.rel (0) target = $region9
  $region8: #{hourglass_forward.16} parent=0 // pred_region
    _
  $region9: #{hourglass_forward.16} parent=0 // pred_fallthru
    _
  %v12 = vld [vmem:[%s0] sm:$0x3]
  %v13 = vld [vmem:[%s1] sm:$0xff]
  %v14 = vld [vmem:[%s1 + $0x8] sm:$0xff]
  %v15 = vld [vmem:[%s1 + $0x10] sm:$0xff]
  %v16 = vld [vmem:[%s1 + $0x18] sm:$0xff]
  %v17 = vld [vmem:[%s1 + $0x20] sm:$0xff]
  %v18 = vld [vmem:[%s1 + $0x28] sm:$0xff]
  %v19 = vld [vmem:[%s1 + $0x30] sm:$0xff]
  %v20 = vld [vmem:[%s1 + $0x38] sm:$0xff]
  %v21 = vld [vmem:[%s1 + $0x40] sm:$0xff]
  %v22 = vld [vmem:[%s1 + $0x48] sm:$0xff]
  %v23 = vld [vmem:[%s1 + $0x50] sm:$0xff]
  %v24 = vld [vmem:[%s1 + $0x58] sm:$0xff]
  %v25 = vld [vmem:[%s1 + $0x60] sm:$0xff]
  %v26 = vld [vmem:[%s1 + $0x68] sm:$0xff]
  %v27 = vld [vmem:[%s1 + $0x70] sm:$0xff]
  %v28 = vld [vmem:[%s1 + $0x78] sm:$0xff]
  %v29 = vld [vmem:[%s1 + $0x80] sm:$0xff]
  %v30 = vld [vmem:[%s1 + $0x88] sm:$0xff]
  %v31 = vld [vmem:[%s1 + $0x90] sm:$0xff]
  %v32 = vld [vmem:[%s1 + $0x98] sm:$0xff]
  %v33 = vld [vmem:[%s1 + $0xa0] sm:$0xff]
  %v34 = vld [vmem:[%s1 + $0xa8] sm:$0xff]
  %v35 = vld [vmem:[%s1 + $0xb0] sm:$0xff]
  %v36 = vld [vmem:[%s1 + $0xb8] sm:$0xff]
  %v37 = vld [vmem:[%s1 + $0xc0] sm:$0xff]
  %v38 = vld [vmem:[%s1 + $0xc8] sm:$0xff]
  %v39 = vld [vmem:[%s1 + $0xd0] sm:$0xff]
  %v40 = vld [vmem:[%s1 + $0xd8] sm:$0xff]
  %v41 = vld [vmem:[%s1 + $0xe0] sm:$0xff]
  %v42 = vld [vmem:[%s1 + $0xe8] sm:$0xff]
  %v43 = vld [vmem:[%s1 + $0xf0] sm:$0xff]
  %v44 = vld [vmem:[%s1 + $0xf8] sm:$0xff]
  %v45 = vld [vmem:[%s1 + $0x100] sm:$0xff]
  %v46 = vld [vmem:[%s1 + $0x108] sm:$0xff]
  %v47 = vld [vmem:[%s1 + $0x110] sm:$0xff]
  %v48 = vld [vmem:[%s1 + $0x118] sm:$0xff]
  %v49 = vld [vmem:[%s1 + $0x120] sm:$0xff]
  %v50 = vld [vmem:[%s1 + $0x128] sm:$0xff]
  %v51 = vld [vmem:[%s1 + $0x130] sm:$0xff]
  %v52 = vld [vmem:[%s1 + $0x138] sm:$0xff]
  %v53 = vld [vmem:[%s1 + $0x140] sm:$0xff]
  %v54 = vld [vmem:[%s1 + $0x148] sm:$0xff]
  %v55 = vld [vmem:[%s1 + $0x150] sm:$0xff]
  %v56 = vld [vmem:[%s1 + $0x158] sm:$0xff]
  %v57 = vld [vmem:[%s1 + $0x160] sm:$0xff]
  %v58 = vld [vmem:[%s1 + $0x168] sm:$0xff]
  %v59 = vld [vmem:[%s1 + $0x170] sm:$0xff]
  %v60 = vld [vmem:[%s1 + $0x178] sm:$0xff]
  %v61 = vld [vmem:[%s1 + $0x180] sm:$0xff]
  %v62 = vld [vmem:[%s1 + $0x188] sm:$0xff]
  %v63 = vld [vmem:[%s1 + $0x190] sm:$0xff]
  %v64 = vld [vmem:[%s1 + $0x198] sm:$0xff]
  %v65 = vld [vmem:[%s1 + $0x1a0] sm:$0x33]
  %v66 = vld [vmem:[%s1 + $0x1a8] sm:$0x33]
  %v67 = vld [vmem:[%s1 + $0x1b0] sm:$0x33]
  %v68 = vld [vmem:[%s1 + $0x1b8] sm:$0x33]
  %v125 = vunpack.c.l.b16 %v13
  %v126 = vunpack.c.h.b16 %v13
  %v127 = vunpack.c.l.b16 %v14
  %v128 = vunpack.c.h.b16 %v14
  %v129 = vunpack.c.l.b16 %v15
  %v130 = vunpack.c.h.b16 %v15
  %v131 = vunpack.c.l.b16 %v16
  %v132 = vunpack.c.h.b16 %v16
  %v133 = vunpack.c.l.b16 %v17
  %v134 = vunpack.c.h.b16 %v17
  %v135 = vunpack.c.l.b16 %v18
  %v136 = vunpack.c.h.b16 %v18
  %v137 = vunpack.c.l.b16 %v19
  %v138 = vunpack.c.h.b16 %v19
  %v139 = vunpack.c.l.b16 %v20
  %v140 = vunpack.c.h.b16 %v20
  %v141 = vunpack.c.l.b16 %v21
  %v142 = vunpack.c.h.b16 %v21
  %v143 = vunpack.c.l.b16 %v22
  %v144 = vunpack.c.h.b16 %v22
  %v145 = vunpack.c.l.b16 %v23
  %v146 = vunpack.c.h.b16 %v23
  %v147 = vunpack.c.l.b16 %v24
  %v148 = vunpack.c.h.b16 %v24
  %v149 = vunpack.c.l.b16 %v25
  %v150 = vunpack.c.h.b16 %v25
  %v151 = vunpack.c.l.b16 %v26
  %v152 = vunpack.c.h.b16 %v26
  %v153 = vunpack.c.l.b16 %v27
  %v154 = vunpack.c.h.b16 %v27
  %v155 = vunpack.c.l.b16 %v28
  %v156 = vunpack.c.h.b16 %v28
  %v157 = vunpack.c.l.b16 %v29
  %v158 = vunpack.c.h.b16 %v29
  %v159 = vunpack.c.l.b16 %v30
  %v160 = vunpack.c.h.b16 %v30
  %v161 = vunpack.c.l.b16 %v31
  %v162 = vunpack.c.h.b16 %v31
  %v163 = vunpack.c.l.b16 %v32
  %v164 = vunpack.c.h.b16 %v32
  %v165 = vunpack.c.l.b16 %v33
  %v166 = vunpack.c.h.b16 %v33
  %v167 = vunpack.c.l.b16 %v34
  %v168 = vunpack.c.h.b16 %v34
  %v169 = vunpack.c.l.b16 %v35
  %v170 = vunpack.c.h.b16 %v35
  %v171 = vunpack.c.l.b16 %v36
  %v172 = vunpack.c.h.b16 %v36
  %v173 = vunpack.c.l.b16 %v37
  %v174 = vunpack.c.h.b16 %v37
  %v175 = vunpack.c.l.b16 %v38
  %v176 = vunpack.c.h.b16 %v38
  %v177 = vunpack.c.l.b16 %v39
  %v178 = vunpack.c.h.b16 %v39
  %v179 = vunpack.c.l.b16 %v40
  %v180 = vunpack.c.h.b16 %v40
  %v181 = vunpack.c.l.b16 %v41
  %v182 = vunpack.c.h.b16 %v41
  %v183 = vunpack.c.l.b16 %v42
  %v184 = vunpack.c.h.b16 %v42
  %v185 = vunpack.c.l.b16 %v43
  %v186 = vunpack.c.h.b16 %v43
  %v187 = vunpack.c.l.b16 %v44
  %v188 = vunpack.c.h.b16 %v44
  %v189 = vunpack.c.l.b16 %v45
  %v190 = vunpack.c.h.b16 %v45
  %v191 = vunpack.c.l.b16 %v46
  %v192 = vunpack.c.h.b16 %v46
  %v193 = vunpack.c.l.b16 %v47
  %v194 = vunpack.c.h.b16 %v47
  %v195 = vunpack.c.l.b16 %v48
  %v196 = vunpack.c.h.b16 %v48
  %v197 = vunpack.c.l.b16 %v49
  %v198 = vunpack.c.h.b16 %v49
  %v199 = vunpack.c.l.b16 %v50
  %v200 = vunpack.c.h.b16 %v50
  %v201 = vunpack.c.l.b16 %v51
  %v202 = vunpack.c.h.b16 %v51
  %v203 = vunpack.c.l.b16 %v52
  %v204 = vunpack.c.h.b16 %v52
  %v205 = vunpack.c.l.b16 %v53
  %v206 = vunpack.c.h.b16 %v53
  %v207 = vunpack.c.l.b16 %v54
  %v208 = vunpack.c.h.b16 %v54
  %v209 = vunpack.c.l.b16 %v55
  %v210 = vunpack.c.h.b16 %v55
  %v211 = vunpack.c.l.b16 %v56
  %v212 = vunpack.c.h.b16 %v56
  %v213 = vunpack.c.l.b16 %v57
  %v214 = vunpack.c.h.b16 %v57
  %v215 = vunpack.c.l.b16 %v58
  %v216 = vunpack.c.h.b16 %v58
  %v217 = vunpack.c.l.b16 %v59
  %v218 = vunpack.c.h.b16 %v59
  %v219 = vunpack.c.l.b16 %v60
  %v220 = vunpack.c.h.b16 %v60
  %v221 = vunpack.c.l.b16 %v61
  %v222 = vunpack.c.h.b16 %v61
  %v223 = vunpack.c.l.b16 %v62
  %v224 = vunpack.c.h.b16 %v62
  %v225 = vunpack.c.l.b16 %v63
  %v226 = vunpack.c.h.b16 %v63
  %v227 = vunpack.c.l.b16 %v64
  %v228 = vunpack.c.h.b16 %v64
  %v229 = vunpack.c.l.b16 %v65
  %v230 = vunpack.c.h.b16 %v65
  %v231 = vunpack.c.l.b16 %v66
  %v232 = vunpack.c.h.b16 %v66
  %v233 = vunpack.c.l.b16 %v67
  %v234 = vunpack.c.h.b16 %v67
  %v235 = vunpack.c.l.b16 %v68
  %v236 = vunpack.c.h.b16 %v68
  %v237 = vpack.c.b16 %v133, %v125
  %v238 = vpack.c.b16 %v134, %v126
  %v239 = vpack.c.b16 %v135, %v127
  %v240 = vpack.c.b16 %v136, %v128
  %v241 = vpack.c.b16 %v137, %v129
  %v242 = vpack.c.b16 %v138, %v130
  %v243 = vpack.c.b16 %v139, %v131
  %v244 = vpack.c.b16 %v140, %v132
  %v245 = vpack.c.b16 %v149, %v141
  %v246 = vpack.c.b16 %v150, %v142
  %v247 = vpack.c.b16 %v151, %v143
  %v248 = vpack.c.b16 %v152, %v144
  %v249 = vpack.c.b16 %v153, %v145
  %v250 = vpack.c.b16 %v154, %v146
  %v251 = vpack.c.b16 %v155, %v147
  %v252 = vpack.c.b16 %v156, %v148
  %v253 = vpack.c.b16 %v165, %v157
  %v254 = vpack.c.b16 %v166, %v158
  %v255 = vpack.c.b16 %v167, %v159
  %v256 = vpack.c.b16 %v168, %v160
  %v257 = vpack.c.b16 %v169, %v161
  %v258 = vpack.c.b16 %v170, %v162
  %v259 = vpack.c.b16 %v171, %v163
  %v260 = vpack.c.b16 %v172, %v164
  %v261 = vpack.c.b16 %v181, %v173
  %v262 = vpack.c.b16 %v182, %v174
  %v263 = vpack.c.b16 %v183, %v175
  %v264 = vpack.c.b16 %v184, %v176
  %v265 = vpack.c.b16 %v185, %v177
  %v266 = vpack.c.b16 %v186, %v178
  %v267 = vpack.c.b16 %v187, %v179
  %v268 = vpack.c.b16 %v188, %v180
  %v269 = vpack.c.b16 %v197, %v189
  %v270 = vpack.c.b16 %v198, %v190
  %v271 = vpack.c.b16 %v199, %v191
  %v272 = vpack.c.b16 %v200, %v192
  %v273 = vpack.c.b16 %v201, %v193
  %v274 = vpack.c.b16 %v202, %v194
  %v275 = vpack.c.b16 %v203, %v195
  %v276 = vpack.c.b16 %v204, %v196
  %v277 = vpack.c.b16 %v213, %v205
  %v278 = vpack.c.b16 %v214, %v206
  %v279 = vpack.c.b16 %v215, %v207
  %v280 = vpack.c.b16 %v216, %v208
  %v281 = vpack.c.b16 %v217, %v209
  %v282 = vpack.c.b16 %v218, %v210
  %v283 = vpack.c.b16 %v219, %v211
  %v284 = vpack.c.b16 %v220, %v212
  %v285 = vpack.c.b16 %v229, %v221
  %v286 = vpack.c.b16 %v230, %v222
  %v287 = vpack.c.b16 %v231, %v223
  %v288 = vpack.c.b16 %v232, %v224
  %v289 = vpack.c.b16 %v233, %v225
  %v290 = vpack.c.b16 %v234, %v226
  %v291 = vpack.c.b16 %v235, %v227
  %v292 = vpack.c.b16 %v236, %v228
  %vm341 = vcmask 883712
  %v343 = vsel %vm341, %v12, 0
  %vm345 = vcmask 1045504
  %v347 = vsel %vm345, %v285, 0
  %v350 = vsel %vm345, %v286, 0
  %v353 = vsel %vm345, %v287, 0
  %v356 = vsel %vm345, %v288, 0
  %v359 = vsel %vm345, %v289, 0
  %v362 = vsel %vm345, %v290, 0
  %v365 = vsel %vm345, %v291, 0
  %v368 = vsel %vm345, %v292, 0
  %370 = vmatprep.subr.bf16.mxu0 %v238
  %371 = vmatpush1.bf16.msra.mxu0 %v237
  %372 = vmatprep.subr.bf16.mxu0 %v246
  %373 = vmatpush1.bf16.msra.mxu0 %v245
  %374 = vmatprep.subr.bf16.mxu0 %v254
  %375 = vmatpush1.bf16.msra.mxu0 %v253
  %376 = vmatprep.subr.bf16.mxu0 %v262
  %377 = vmatpush1.bf16.msra.mxu0 %v261
  %378 = vmatprep.subr.bf16.mxu0 %v270
  %379 = vmatpush1.bf16.msra.mxu0 %v269
  %380 = vmatprep.subr.bf16.mxu0 %v278
  %381 = vmatpush1.bf16.msra.mxu0 %v277
  %382 = vmatprep.subr.bf16.mxu0 %v350
  %383 = vmatpush1.bf16.msra.mxu0 %v347
  %384 = vmatprep.subr.bf16.mxu0 0
  %385 = vmatpush1.bf16.msra.mxu0 0
  %386 = vmatprep.subr.bf16.mxu0 0
  %387 = vmatpush1.bf16.msra.mxu0 0
  %388 = vmatprep.subr.bf16.mxu0 0
  %389 = vmatpush1.bf16.msra.mxu0 0
  %390 = vmatprep.subr.bf16.mxu0 0
  %391 = vmatpush1.bf16.msra.mxu0 0
  %392 = vmatprep.subr.bf16.mxu0 0
  %393 = vmatpush1.bf16.msra.mxu0 0
  %394 = vmatprep.subr.bf16.mxu0 0
  %395 = vmatpush1.bf16.msra.mxu0 0
  %396 = vmatprep.subr.bf16.mxu0 0
  %397 = vmatpush1.bf16.msra.mxu0 0
  %398 = vmatprep.subr.bf16.mxu0 0
  %399 = vmatpush1.bf16.msra.mxu0 0
  %400 = vmatprep.subr.bf16.mxu0 0
  %401 = vmatpush1.bf16.msra.mxu0 0
  %402 = vmatprep.mubr.bf16.mxu0 0
  %403 = vmatmul.mubr.bf16.gmra.mrb[0].mxu0 %v343
  %v404 = vpop.f32.mrb[0].mxu0
  %v405 = vadd.f32 0.0, %v404
  %v406 = vpop.f32.mrb[0].mxu0
  %v407 = vadd.f32 0.0, %v406
  %v408 = vpop.f32.mrb[0].mxu0
  %v409 = vpop.f32.mrb[0].mxu0
  %410 = vdwg.mxu0
  %411 = vmatprep.subr.bf16.mxu0 %v240
  %412 = vmatpush1.bf16.msra.mxu0 %v239
  %413 = vmatprep.subr.bf16.mxu0 %v248
  %414 = vmatpush1.bf16.msra.mxu0 %v247
  %415 = vmatprep.subr.bf16.mxu0 %v256
  %416 = vmatpush1.bf16.msra.mxu0 %v255
  %417 = vmatprep.subr.bf16.mxu0 %v264
  %418 = vmatpush1.bf16.msra.mxu0 %v263
  %419 = vmatprep.subr.bf16.mxu0 %v272
  %420 = vmatpush1.bf16.msra.mxu0 %v271
  %421 = vmatprep.subr.bf16.mxu0 %v280
  %422 = vmatpush1.bf16.msra.mxu0 %v279
  %423 = vmatprep.subr.bf16.mxu0 %v356
  %424 = vmatpush1.bf16.msra.mxu0 %v353
  %425 = vmatprep.subr.bf16.mxu0 0
  %426 = vmatpush1.bf16.msra.mxu0 0
  %427 = vmatprep.subr.bf16.mxu0 0
  %428 = vmatpush1.bf16.msra.mxu0 0
  %429 = vmatprep.subr.bf16.mxu0 0
  %430 = vmatpush1.bf16.msra.mxu0 0
  %431 = vmatprep.subr.bf16.mxu0 0
  %432 = vmatpush1.bf16.msra.mxu0 0
  %433 = vmatprep.subr.bf16.mxu0 0
  %434 = vmatpush1.bf16.msra.mxu0 0
  %435 = vmatprep.subr.bf16.mxu0 0
  %436 = vmatpush1.bf16.msra.mxu0 0
  %437 = vmatprep.subr.bf16.mxu0 0
  %438 = vmatpush1.bf16.msra.mxu0 0
  %439 = vmatprep.subr.bf16.mxu0 0
  %440 = vmatpush1.bf16.msra.mxu0 0
  %441 = vmatprep.subr.bf16.mxu0 0
  %442 = vmatpush1.bf16.msra.mxu0 0
  %443 = vmatprep.mubr.bf16.mxu0 0
  %444 = vmatmul.mubr.bf16.gmra.mrb[0].mxu0 %v343
  %v445 = vpop.f32.mrb[0].mxu0
  %v446 = vadd.f32 0.0, %v445
  %v447 = vpop.f32.mrb[0].mxu0
  %v448 = vadd.f32 0.0, %v447
  %v449 = vpop.f32.mrb[0].mxu0
  %v450 = vpop.f32.mrb[0].mxu0
  %451 = vdwg.mxu0
  %452 = vmatprep.subr.bf16.mxu0 %v242
  %453 = vmatpush1.bf16.msra.mxu0 %v241
  %454 = vmatprep.subr.bf16.mxu0 %v250
  %455 = vmatpush1.bf16.msra.mxu0 %v249
  %456 = vmatprep.subr.bf16.mxu0 %v258
  %457 = vmatpush1.bf16.msra.mxu0 %v257
  %458 = vmatprep.subr.bf16.mxu0 %v266
  %459 = vmatpush1.bf16.msra.mxu0 %v265
  %460 = vmatprep.subr.bf16.mxu0 %v274
  %461 = vmatpush1.bf16.msra.mxu0 %v273
  %462 = vmatprep.subr.bf16.mxu0 %v282
  %463 = vmatpush1.bf16.msra.mxu0 %v281
  %464 = vmatprep.subr.bf16.mxu0 %v362
  %465 = vmatpush1.bf16.msra.mxu0 %v359
  %466 = vmatprep.subr.bf16.mxu0 0
  %467 = vmatpush1.bf16.msra.mxu0 0
  %468 = vmatprep.subr.bf16.mxu0 0
  %469 = vmatpush1.bf16.msra.mxu0 0
  %470 = vmatprep.subr.bf16.mxu0 0
  %471 = vmatpush1.bf16.msra.mxu0 0
  %472 = vmatprep.subr.bf16.mxu0 0
  %473 = vmatpush1.bf16.msra.mxu0 0
  %474 = vmatprep.subr.bf16.mxu0 0
  %475 = vmatpush1.bf16.msra.mxu0 0
  %476 = vmatprep.subr.bf16.mxu0 0
  %477 = vmatpush1.bf16.msra.mxu0 0
  %478 = vmatprep.subr.bf16.mxu0 0
  %479 = vmatpush1.bf16.msra.mxu0 0
  %480 = vmatprep.subr.bf16.mxu0 0
  %481 = vmatpush1.bf16.msra.mxu0 0
  %482 = vmatprep.subr.bf16.mxu0 0
  %483 = vmatpush1.bf16.msra.mxu0 0
  %484 = vmatprep.mubr.bf16.mxu0 0
  %485 = vmatmul.mubr.bf16.gmra.mrb[0].mxu0 %v343
  %v486 = vpop.f32.mrb[0].mxu0
  %v487 = vadd.f32 0.0, %v486
  %v488 = vpop.f32.mrb[0].mxu0
  %v489 = vadd.f32 0.0, %v488
  %v490 = vpop.f32.mrb[0].mxu0
  %v491 = vpop.f32.mrb[0].mxu0
  %492 = vdwg.mxu0
  %493 = vmatprep.subr.bf16.mxu0 %v244
  %494 = vmatpush1.bf16.msra.mxu0 %v243
  %495 = vmatprep.subr.bf16.mxu0 %v252
  %496 = vmatpush1.bf16.msra.mxu0 %v251
  %497 = vmatprep.subr.bf16.mxu0 %v260
  %498 = vmatpush1.bf16.msra.mxu0 %v259
  %499 = vmatprep.subr.bf16.mxu0 %v268
  %500 = vmatpush1.bf16.msra.mxu0 %v267
  %501 = vmatprep.subr.bf16.mxu0 %v276
  %502 = vmatpush1.bf16.msra.mxu0 %v275
  %503 = vmatprep.subr.bf16.mxu0 %v284
  %504 = vmatpush1.bf16.msra.mxu0 %v283
  %505 = vmatprep.subr.bf16.mxu0 %v368
  %506 = vmatpush1.bf16.msra.mxu0 %v365
  %507 = vmatprep.subr.bf16.mxu0 0
  %508 = vmatpush1.bf16.msra.mxu0 0
  %509 = vmatprep.subr.bf16.mxu0 0
  %510 = vmatpush1.bf16.msra.mxu0 0
  %511 = vmatprep.subr.bf16.mxu0 0
  %512 = vmatpush1.bf16.msra.mxu0 0
  %513 = vmatprep.subr.bf16.mxu0 0
  %514 = vmatpush1.bf16.msra.mxu0 0
  %515 = vmatprep.subr.bf16.mxu0 0
  %516 = vmatpush1.bf16.msra.mxu0 0
  %517 = vmatprep.subr.bf16.mxu0 0
  %518 = vmatpush1.bf16.msra.mxu0 0
  %519 = vmatprep.subr.bf16.mxu0 0
  %520 = vmatpush1.bf16.msra.mxu0 0
  %521 = vmatprep.subr.bf16.mxu0 0
  %522 = vmatpush1.bf16.msra.mxu0 0
  %523 = vmatprep.subr.bf16.mxu0 0
  %524 = vmatpush1.bf16.msra.mxu0 0
  %525 = vmatprep.mubr.bf16.mxu0 0
  %526 = vmatmul.mubr.bf16.gmra.mrb[0].mxu0 %v343
  %v527 = vpop.f32.mrb[0].mxu0
  %v528 = vadd.f32 0.0, %v527
  %v529 = vpop.f32.mrb[0].mxu0
  %v530 = vadd.f32 0.0, %v529
  %v531 = vpop.f32.mrb[0].mxu0
  %v532 = vpop.f32.mrb[0].mxu0
  %533 = vdwg.mxu0
  %v542 = vcombine.low %v405, %v407
  %v543 = vcombine.low %v446, %v448
  %v544 = vcombine.low %v487, %v489
  %v545 = vcombine.low %v528, %v530
  %550 = vst [vmem:[%s2] sm:$0xff] %v542
  %551 = vst [vmem:[%s2 + $0x8] sm:$0xff] %v543
  %552 = vst [vmem:[%s2 + $0x10] sm:$0xff] %v544
  %553 = vst [vmem:[%s2 + $0x18] sm:$0xff] %v545
  // Predicated region
  $region10: #{hourglass_forward.16} parent=0 // pred_check
    _
  $region11: #{hourglass_forward.16} parent=0 // pred_check_branch
    %555 = sbr.rel (0) target = $region13
  $region12: #{hourglass_forward.16} parent=0 // pred_region
    _
  $region13: #{hourglass_forward.16} parent=0 // pred_fallthru
    _
  // Predicated region
  $region14: #{hourglass_forward.16} parent=0 // pred_check
    _
  $region15: #{hourglass_forward.16} parent=0 // pred_check_branch
    %557 = sbr.rel (0) target = $region17
  $region16: #{hourglass_forward.16} parent=0 // pred_region
    _
  $region17: #{hourglass_forward.16} parent=0 // pred_fallthru
    _

// kernel: hourglass_forward.17
$region0: #{hourglass_forward.17}
  #allocation0 [shape = 'u32[]', space=smem, size = 0x4, offset = 0x4, fixed_abs, tag = 'smem constant byte address 0x4 - core index']
  #allocation1 [shape = 'u32[144,128]{1,0:T(1,128)}', space=vmem, size = 0x12000, scoped, tag = 'internal scratch']
  %s0 = inlined_call_operand.vmem [shape: f32[4,1024], index: 0, kind: input, shape index: {}]
  %s1 = inlined_call_operand.vmem [shape: f32[4,1], index: 1, kind: input, shape index: {}]
  %s2 = inlined_call_operand.vmem [shape: f32[4,1], index: 2, kind: input, shape index: {}]
  %s3 = inlined_call_operand.vmem [shape: f32[4,1024], index: 3, kind: output, shape index: {}]
  %s4 = sld [smem:[#allocation0]]
  $region22: #{hourglass_forward.17} parent=0
    _
  %s6 = ssub.s32 1, %s4
  %s7 = scalar_select 0, %s6, %s4
  // Predicated region
  $region2: #{hourglass_forward.17} parent=0 // pred_check
    _
  $region3: #{hourglass_forward.17} parent=0 // pred_check_branch
    %9 = sbr.rel (0) target = $region5
  $region4: #{hourglass_forward.17} parent=0 // pred_region
    _
  $region5: #{hourglass_forward.17} parent=0 // pred_fallthru
    _
  // Predicated region
  $region6: #{hourglass_forward.17} parent=0 // pred_check
    _
  $region7: #{hourglass_forward.17} parent=0 // pred_check_branch
    %11 = sbr.rel (0) target = $region9
  $region8: #{hourglass_forward.17} parent=0 // pred_region
    _
  $region9: #{hourglass_forward.17} parent=0 // pred_fallthru
    _
  // Predicated region
  $region10: #{hourglass_forward.17} parent=0 // pred_check
    _
  $region11: #{hourglass_forward.17} parent=0 // pred_check_branch
    %13 = sbr.rel (0) target = $region13
  $region12: #{hourglass_forward.17} parent=0 // pred_region
    _
  $region13: #{hourglass_forward.17} parent=0 // pred_fallthru
    _
  %v14 = vld [vmem:[%s0] sm:$0xff]
  %v15 = vld [vmem:[%s0 + $0x8] sm:$0xff]
  %v16 = vld [vmem:[%s0 + $0x10] sm:$0xff]
  %v17 = vld [vmem:[%s0 + $0x18] sm:$0xff]
  %v18 = vld [vmem:[%s1] sm:$0xf]
  %20 = vset.pattern.permute.xlu0 0
  %21 = vperm.xlu0 %20, %v18
  %v22 = vpop.permute.xlu0 %21
  %v24 = vunpack.c.l.s4 839922192
  %v25 = vunpack.c.0.s8 %v24
  %v26 = vlaneseq
  %v27 = vshrl.u32 %v26, 7
  %v28 = vsub.s32 %v25, %v27
  %v29 = vrot.slane %v22, %v28
  %v31 = vmul.f32 %v14, %v29
  %v32 = vmul.f32 %v15, %v29
  %v33 = vmul.f32 %v16, %v29
  %v34 = vmul.f32 %v17, %v29
  %v35 = vld [vmem:[%s2] sm:$0xf]
  %37 = vset.pattern.permute.xlu0 0
  %38 = vperm.xlu0 %37, %v35
  %v39 = vpop.permute.xlu0 %38
  %v41 = vunpack.c.l.s4 839922192
  %v42 = vunpack.c.0.s8 %v41
  %v43 = vlaneseq
  %v44 = vshrl.u32 %v43, 7
  %v45 = vsub.s32 %v42, %v44
  %v46 = vrot.slane %v39, %v45
  %v48 = vadd.f32 %v31, %v46
  %v49 = vadd.f32 %v32, %v46
  %v50 = vadd.f32 %v33, %v46
  %v51 = vadd.f32 %v34, %v46
  %vm52 = vcmp.ge.f32.partialorder %v48, 0.0
  %vm53 = vcmp.ge.f32.partialorder %v49, 0.0
  %vm54 = vcmp.ge.f32.partialorder %v50, 0.0
  %vm55 = vcmp.ge.f32.partialorder %v51, 0.0
  %v56 = vmul.f32 %v48, 0.2
  %v57 = vmul.f32 %v49, 0.2
  %v58 = vmul.f32 %v50, 0.2
  %v59 = vmul.f32 %v51, 0.2
  %v60 = vsel %vm52, %v48, %v56
  %v61 = vsel %vm53, %v49, %v57
  %v62 = vsel %vm54, %v50, %v58
  %v63 = vsel %vm55, %v51, %v59
  %64 = vst [vmem:[%s3] sm:$0xff] %v60
  %65 = vst [vmem:[%s3 + $0x8] sm:$0xff] %v61
  %66 = vst [vmem:[%s3 + $0x10] sm:$0xff] %v62
  %67 = vst [vmem:[%s3 + $0x18] sm:$0xff] %v63
  // Predicated region
  $region14: #{hourglass_forward.17} parent=0 // pred_check
    _
  $region15: #{hourglass_forward.17} parent=0 // pred_check_branch
    %69 = sbr.rel (0) target = $region17
  $region16: #{hourglass_forward.17} parent=0 // pred_region
    _
  $region17: #{hourglass_forward.17} parent=0 // pred_fallthru
    _
  // Predicated region
  $region18: #{hourglass_forward.17} parent=0 // pred_check
    _
  $region19: #{hourglass_forward.17} parent=0 // pred_check_branch
    %71 = sbr.rel (0) target = $region21
  $region20: #{hourglass_forward.17} parent=0 // pred_region
    _
  $region21: #{hourglass_forward.17} parent=0 // pred_fallthru
    _

// kernel: hourglass_forward.20
$region0: #{hourglass_forward.20}
  #allocation0 [shape = 'u32[]', space=smem, size = 0x4, offset = 0x4, fixed_abs, tag = 'smem constant byte address 0x4 - core index']
  #allocation1 [shape = 'u32[144,128]{1,0:T(1,128)}', space=vmem, size = 0x12000, scoped, tag = 'internal scratch']
  %s0 = inlined_call_operand.vmem [shape: bf16[1,8,108], index: 0, kind: input, shape index: {}]
  %s1 = inlined_call_operand.vmem [shape: bf16[1,108,128], index: 1, kind: input, shape index: {}]
  %s2 = inlined_call_operand.vmem [shape: f32[1,8,128], index: 2, kind: output, shape index: {}]
  %s3 = sld [smem:[#allocation0]]
  $region18: #{hourglass_forward.20} parent=0
    _
  %s5 = ssub.s32 1, %s3
  %s6 = scalar_select 0, %s5, %s3
  // Predicated region
  $region2: #{hourglass_forward.20} parent=0 // pred_check
    _
  $region3: #{hourglass_forward.20} parent=0 // pred_check_branch
    %8 = sbr.rel (0) target = $region5
  $region4: #{hourglass_forward.20} parent=0 // pred_region
    _
  $region5: #{hourglass_forward.20} parent=0 // pred_fallthru
    _
  // Predicated region
  $region6: #{hourglass_forward.20} parent=0 // pred_check
    _
  $region7: #{hourglass_forward.20} parent=0 // pred_check_branch
    %10 = sbr.rel (0) target = $region9
  $region8: #{hourglass_forward.20} parent=0 // pred_region
    _
  $region9: #{hourglass_forward.20} parent=0 // pred_fallthru
    _
  %v12 = vld [vmem:[%s0] sm:$0xf]
  %v13 = vld [vmem:[%s1] sm:$0xf]
  %v14 = vld [vmem:[%s1 + $0x4] sm:$0xf]
  %v15 = vld [vmem:[%s1 + $0x8] sm:$0xf]
  %v16 = vld [vmem:[%s1 + $0xc] sm:$0xf]
  %v17 = vld [vmem:[%s1 + $0x10] sm:$0xf]
  %v18 = vld [vmem:[%s1 + $0x14] sm:$0xf]
  %v19 = vld [vmem:[%s1 + $0x18] sm:$0xf]
  %v20 = vld [vmem:[%s1 + $0x1c] sm:$0xf]
  %v21 = vld [vmem:[%s1 + $0x20] sm:$0xf]
  %v22 = vld [vmem:[%s1 + $0x24] sm:$0xf]
  %v23 = vld [vmem:[%s1 + $0x28] sm:$0xf]
  %v24 = vld [vmem:[%s1 + $0x2c] sm:$0xf]
  %v25 = vld [vmem:[%s1 + $0x30] sm:$0xf]
  %v26 = vld [vmem:[%s1 + $0x34] sm:$0x3]
  %v41 = vunpack.c.l.b16 %v13
  %v42 = vunpack.c.l.b16 %v14
  %v43 = vunpack.c.l.b16 %v15
  %v44 = vunpack.c.l.b16 %v16
  %v45 = vunpack.c.l.b16 %v17
  %v46 = vunpack.c.l.b16 %v18
  %v47 = vunpack.c.l.b16 %v19
  %v48 = vunpack.c.l.b16 %v20
  %v49 = vunpack.c.l.b16 %v21
  %v50 = vunpack.c.l.b16 %v22
  %v51 = vunpack.c.l.b16 %v23
  %v52 = vunpack.c.l.b16 %v24
  %v53 = vunpack.c.l.b16 %v25
  %v54 = vunpack.c.l.b16 %v26
  %v55 = vpack.c.b16 %v42, %v41
  %v56 = vpack.c.b16 %v44, %v43
  %v57 = vpack.c.b16 %v46, %v45
  %v58 = vpack.c.b16 %v48, %v47
  %v59 = vpack.c.b16 %v50, %v49
  %v60 = vpack.c.b16 %v52, %v51
  %v61 = vpack.c.b16 %v54, %v53
  %vm68 = vcmask 883712
  %v70 = vsel %vm68, %v12, 0
  %vm72 = vcmask 1045504
  %v74 = vsel %vm72, %v61, 0
  %76 = vmatprep.subr.bf16.mxu0 0
  %77 = vmatpush1.bf16.msra.mxu0 %v55
  %78 = vmatprep.subr.bf16.mxu0 0
  %79 = vmatpush1.bf16.msra.mxu0 %v56
  %80 = vmatprep.subr.bf16.mxu0 0
  %81 = vmatpush1.bf16.msra.mxu0 %v57
  %82 = vmatprep.subr.bf16.mxu0 0
  %83 = vmatpush1.bf16.msra.mxu0 %v58
  %84 = vmatprep.subr.bf16.mxu0 0
  %85 = vmatpush1.bf16.msra.mxu0 %v59
  %86 = vmatprep.subr.bf16.mxu0 0
  %87 = vmatpush1.bf16.msra.mxu0 %v60
  %88 = vmatprep.subr.bf16.mxu0 0
  %89 = vmatpush1.bf16.msra.mxu0 %v74
  %90 = vmatprep.subr.bf16.mxu0 0
  %91 = vmatpush1.bf16.msra.mxu0 0
  %92 = vmatprep.subr.bf16.mxu0 0
  %93 = vmatpush1.bf16.msra.mxu0 0
  %94 = vmatprep.subr.bf16.mxu0 0
  %95 = vmatpush1.bf16.msra.mxu0 0
  %96 = vmatprep.subr.bf16.mxu0 0
  %97 = vmatpush1.bf16.msra.mxu0 0
  %98 = vmatprep.subr.bf16.mxu0 0
  %99 = vmatpush1.bf16.msra.mxu0 0
  %100 = vmatprep.subr.bf16.mxu0 0
  %101 = vmatpush1.bf16.msra.mxu0 0
  %102 = vmatprep.subr.bf16.mxu0 0
  %103 = vmatpush1.bf16.msra.mxu0 0
  %104 = vmatprep.subr.bf16.mxu0 0
  %105 = vmatpush1.bf16.msra.mxu0 0
  %106 = vmatprep.subr.bf16.mxu0 0
  %107 = vmatpush1.bf16.msra.mxu0 0
  %108 = vmatprep.mubr.bf16.mxu0 0
  %109 = vmatmul.mubr.bf16.gmra.mrb[0].mxu0 %v70
  %v110 = vpop.f32.mrb[0].mxu0
  %v111 = vadd.f32 0.0, %v110
  %v112 = vpop.f32.mrb[0].mxu0
  %v113 = vpop.f32.mrb[0].mxu0
  %v114 = vpop.f32.mrb[0].mxu0
  %115 = vdwg.mxu0
  %116 = vst [vmem:[%s2] sm:$0xff] %v111
  // Predicated region
  $region10: #{hourglass_forward.20} parent=0 // pred_check
    _
  $region11: #{hourglass_forward.20} parent=0 // pred_check_branch
    %118 = sbr.rel (0) target = $region13
  $region12: #{hourglass_forward.20} parent=0 // pred_region
    _
  $region13: #{hourglass_forward.20} parent=0 // pred_fallthru
    _
  // Predicated region
  $region14: #{hourglass_forward.20} parent=0 // pred_check
    _
  $region15: #{hourglass_forward.20} parent=0 // pred_check_branch
    %120 = sbr.rel (0) target = $region17
  $region16: #{hourglass_forward.20} parent=0 // pred_region
    _
  $region17: #{hourglass_forward.20} parent=0 // pred_fallthru
    _

// kernel: hourglass_forward.21
$region0: #{hourglass_forward.21}
  #allocation0 [shape = 'u32[]', space=smem, size = 0x4, offset = 0x4, fixed_abs, tag = 'smem constant byte address 0x4 - core index']
  #allocation1 [shape = 'u32[144,128]{1,0:T(1,128)}', space=vmem, size = 0x12000, scoped, tag = 'internal scratch']
  %s0 = inlined_call_operand.vmem [shape: f32[8,128], index: 0, kind: input, shape index: {}]
  %s1 = inlined_call_operand.vmem [shape: f32[8,1], index: 1, kind: input, shape index: {}]
  %s2 = inlined_call_operand.vmem [shape: f32[8,1], index: 2, kind: input, shape index: {}]
  %s3 = inlined_call_operand.vmem [shape: f32[8,128], index: 3, kind: output, shape index: {}]
  %s4 = sld [smem:[#allocation0]]
  $region22: #{hourglass_forward.21} parent=0
    _
  %s6 = ssub.s32 1, %s4
  %s7 = scalar_select 0, %s6, %s4
  // Predicated region
  $region2: #{hourglass_forward.21} parent=0 // pred_check
    _
  $region3: #{hourglass_forward.21} parent=0 // pred_check_branch
    %9 = sbr.rel (0) target = $region5
  $region4: #{hourglass_forward.21} parent=0 // pred_region
    _
  $region5: #{hourglass_forward.21} parent=0 // pred_fallthru
    _
  // Predicated region
  $region6: #{hourglass_forward.21} parent=0 // pred_check
    _
  $region7: #{hourglass_forward.21} parent=0 // pred_check_branch
    %11 = sbr.rel (0) target = $region9
  $region8: #{hourglass_forward.21} parent=0 // pred_region
    _
  $region9: #{hourglass_forward.21} parent=0 // pred_fallthru
    _
  // Predicated region
  $region10: #{hourglass_forward.21} parent=0 // pred_check
    _
  $region11: #{hourglass_forward.21} parent=0 // pred_check_branch
    %13 = sbr.rel (0) target = $region13
  $region12: #{hourglass_forward.21} parent=0 // pred_region
    _
  $region13: #{hourglass_forward.21} parent=0 // pred_fallthru
    _
  %v14 = vld [vmem:[%s0] sm:$0xff]
  %v15 = vld [vmem:[%s1] sm:$0xff]
  %17 = vset.pattern.permute.xlu0 0
  %18 = vperm.xlu0 %17, %v15
  %v19 = vpop.permute.xlu0 %18
  %v21 = vmul.f32 %v14, %v19
  %v22 = vld [vmem:[%s2] sm:$0xff]
  %24 = vset.pattern.permute.xlu0 0
  %25 = vperm.xlu0 %24, %v22
  %v26 = vpop.permute.xlu0 %25
  %v28 = vadd.f32 %v21, %v26
  %vm29 = vcmp.ge.f32.partialorder %v28, 0.0
  %v30 = vmul.f32 %v28, 0.2
  %v31 = vsel %vm29, %v28, %v30
  %32 = vst [vmem:[%s3] sm:$0xff] %v31
  // Predicated region
  $region14: #{hourglass_forward.21} parent=0 // pred_check
    _
  $region15: #{hourglass_forward.21} parent=0 // pred_check_branch
    %34 = sbr.rel (0) target = $region17
  $region16: #{hourglass_forward.21} parent=0 // pred_region
    _
  $region17: #{hourglass_forward.21} parent=0 // pred_fallthru
    _
  // Predicated region
  $region18: #{hourglass_forward.21} parent=0 // pred_check
    _
  $region19: #{hourglass_forward.21} parent=0 // pred_check_branch
    %36 = sbr.rel (0) target = $region21
  $region20: #{hourglass_forward.21} parent=0 // pred_region
    _
  $region21: #{hourglass_forward.21} parent=0 // pred_fallthru
    _

// kernel: hourglass_forward.22
$region0: #{hourglass_forward.22}
  #allocation0 [shape = 'u32[]', space=smem, size = 0x4, offset = 0x4, fixed_abs, tag = 'smem constant byte address 0x4 - core index']
  #allocation1 [shape = 'u32[144,128]{1,0:T(1,128)}', space=vmem, size = 0x12000, scoped, tag = 'internal scratch']
  %s0 = inlined_call_operand.vmem [shape: bf16[1,8,216], index: 0, kind: input, shape index: {}]
  %s1 = inlined_call_operand.vmem [shape: bf16[1,216,128], index: 1, kind: input, shape index: {}]
  %s2 = inlined_call_operand.vmem [shape: f32[1,8,128], index: 2, kind: output, shape index: {}]
  %s3 = sld [smem:[#allocation0]]
  $region18: #{hourglass_forward.22} parent=0
    _
  %s5 = ssub.s32 1, %s3
  %s6 = scalar_select 0, %s5, %s3
  // Predicated region
  $region2: #{hourglass_forward.22} parent=0 // pred_check
    _
  $region3: #{hourglass_forward.22} parent=0 // pred_check_branch
    %8 = sbr.rel (0) target = $region5
  $region4: #{hourglass_forward.22} parent=0 // pred_region
    _
  $region5: #{hourglass_forward.22} parent=0 // pred_fallthru
    _
  // Predicated region
  $region6: #{hourglass_forward.22} parent=0 // pred_check
    _
  $region7: #{hourglass_forward.22} parent=0 // pred_check_branch
    %10 = sbr.rel (0) target = $region9
  $region8: #{hourglass_forward.22} parent=0 // pred_region
    _
  $region9: #{hourglass_forward.22} parent=0 // pred_fallthru
    _
  %v12 = vld [vmem:[%s0] sm:$0xff]
  %v13 = vld [vmem:[%s1] sm:$0xf]
  %v14 = vld [vmem:[%s1 + $0x4] sm:$0xf]
  %v15 = vld [vmem:[%s1 + $0x8] sm:$0xf]
  %v16 = vld [vmem:[%s1 + $0xc] sm:$0xf]
  %v17 = vld [vmem:[%s1 + $0x10] sm:$0xf]
  %v18 = vld [vmem:[%s1 + $0x14] sm:$0xf]
  %v19 = vld [vmem:[%s1 + $0x18] sm:$0xf]
  %v20 = vld [vmem:[%s1 + $0x1c] sm:$0xf]
  %v21 = vld [vmem:[%s1 + $0x20] sm:$0xf]
  %v22 = vld [vmem:[%s1 + $0x24] sm:$0xf]
  %v23 = vld [vmem:[%s1 + $0x28] sm:$0xf]
  %v24 = vld [vmem:[%s1 + $0x2c] sm:$0xf]
  %v25 = vld [vmem:[%s1 + $0x30] sm:$0xf]
  %v26 = vld [vmem:[%s1 + $0x34] sm:$0xf]
  %v27 = vld [vmem:[%s1 + $0x38] sm:$0xf]
  %v28 = vld [vmem:[%s1 + $0x3c] sm:$0xf]
  %v29 = vld [vmem:[%s1 + $0x40] sm:$0xf]
  %v30 = vld [vmem:[%s1 + $0x44] sm:$0xf]
  %v31 = vld [vmem:[%s1 + $0x48] sm:$0xf]
  %v32 = vld [vmem:[%s1 + $0x4c] sm:$0xf]
  %v33 = vld [vmem:[%s1 + $0x50] sm:$0xf]
  %v34 = vld [vmem:[%s1 + $0x54] sm:$0xf]
  %v35 = vld [vmem:[%s1 + $0x58] sm:$0xf]
  %v36 = vld [vmem:[%s1 + $0x5c] sm:$0xf]
  %v37 = vld [vmem:[%s1 + $0x60] sm:$0xf]
  %v38 = vld [vmem:[%s1 + $0x64] sm:$0xf]
  %v39 = vld [vmem:[%s1 + $0x68] sm:$0xf]
  %v41 = vunpack.c.l.b16 %v12
  %v42 = vunpack.c.h.b16 %v12
  %v43 = vpack.c.b16 %v41, %v41
  %v44 = vpack.c.b16 %v42, %v42
  %v73 = vunpack.c.l.b16 %v13
  %v74 = vunpack.c.l.b16 %v14
  %v75 = vunpack.c.l.b16 %v15
  %v76 = vunpack.c.l.b16 %v16
  %v77 = vunpack.c.l.b16 %v17
  %v78 = vunpack.c.l.b16 %v18
  %v79 = vunpack.c.l.b16 %v19
  %v80 = vunpack.c.l.b16 %v20
  %v81 = vunpack.c.l.b16 %v21
  %v82 = vunpack.c.l.b16 %v22
  %v83 = vunpack.c.l.b16 %v23
  %v84 = vunpack.c.l.b16 %v24
  %v85 = vunpack.c.l.b16 %v25
  %v86 = vunpack.c.l.b16 %v26
  %v87 = vunpack.c.l.b16 %v27
  %v88 = vunpack.c.l.b16 %v28
  %v89 = vunpack.c.l.b16 %v29
  %v90 = vunpack.c.l.b16 %v30
  %v91 = vunpack.c.l.b16 %v31
  %v92 = vunpack.c.l.b16 %v32
  %v93 = vunpack.c.l.b16 %v33
  %v94 = vunpack.c.l.b16 %v34
  %v95 = vunpack.c.l.b16 %v35
  %v96 = vunpack.c.l.b16 %v36
  %v97 = vunpack.c.l.b16 %v37
  %v98 = vunpack.c.l.b16 %v38
  %v99 = vunpack.c.l.b16 %v39
  %v100 = vpack.c.b16 %v74, %v73
  %v101 = vpack.c.b16 %v76, %v75
  %v102 = vpack.c.b16 %v78, %v77
  %v103 = vpack.c.b16 %v80, %v79
  %v104 = vpack.c.b16 %v82, %v81
  %v105 = vpack.c.b16 %v84, %v83
  %v106 = vpack.c.b16 %v86, %v85
  %v107 = vpack.c.b16 %v88, %v87
  %v108 = vpack.c.b16 %v90, %v89
  %v109 = vpack.c.b16 %v92, %v91
  %v110 = vpack.c.b16 %v94, %v93
  %v111 = vpack.c.b16 %v96, %v95
  %v112 = vpack.c.b16 %v98, %v97
  %v113 = vpack.c.b16 %v99, %v99
  %vm127 = vcmask 719872
  %v129 = vsel %vm127, %v44, 0
  %vm131 = vcmask 1043456
  %v133 = vsel %vm131, %v113, 0
  %135 = vmatprep.subr.bf16.mxu0 0
  %136 = vmatpush1.bf16.msra.mxu0 %v100
  %137 = vmatprep.subr.bf16.mxu0 0
  %138 = vmatpush1.bf16.msra.mxu0 %v101
  %139 = vmatprep.subr.bf16.mxu0 0
  %140 = vmatpush1.bf16.msra.mxu0 %v102
  %141 = vmatprep.subr.bf16.mxu0 0
  %142 = vmatpush1.bf16.msra.mxu0 %v103
  %143 = vmatprep.subr.bf16.mxu0 0
  %144 = vmatpush1.bf16.msra.mxu0 %v104
  %145 = vmatprep.subr.bf16.mxu0 0
  %146 = vmatpush1.bf16.msra.mxu0 %v105
  %147 = vmatprep.subr.bf16.mxu0 0
  %148 = vmatpush1.bf16.msra.mxu0 %v106
  %149 = vmatprep.subr.bf16.mxu0 0
  %150 = vmatpush1.bf16.msra.mxu0 %v107
  %151 = vmatprep.subr.bf16.mxu0 0
  %152 = vmatpush1.bf16.msra.mxu0 %v108
  %153 = vmatprep.subr.bf16.mxu0 0
  %154 = vmatpush1.bf16.msra.mxu0 %v109
  %155 = vmatprep.subr.bf16.mxu0 0
  %156 = vmatpush1.bf16.msra.mxu0 %v110
  %157 = vmatprep.subr.bf16.mxu0 0
  %158 = vmatpush1.bf16.msra.mxu0 %v111
  %159 = vmatprep.subr.bf16.mxu0 0
  %160 = vmatpush1.bf16.msra.mxu0 %v112
  %161 = vmatprep.subr.bf16.mxu0 0
  %162 = vmatpush1.bf16.msra.mxu0 %v133
  %163 = vmatprep.subr.bf16.mxu0 0
  %164 = vmatpush1.bf16.msra.mxu0 0
  %165 = vmatprep.subr.bf16.mxu0 0
  %166 = vmatpush1.bf16.msra.mxu0 0
  %167 = vmatprep.mubr.bf16.mxu0 %v129
  %168 = vmatmul.mubr.bf16.gmra.mrb[0].mxu0 %v43
  %v169 = vpop.f32.mrb[0].mxu0
  %v170 = vadd.f32 0.0, %v169
  %v171 = vpop.f32.mrb[0].mxu0
  %v172 = vpop.f32.mrb[0].mxu0
  %v173 = vpop.f32.mrb[0].mxu0
  %174 = vdwg.mxu0
  %175 = vst [vmem:[%s2] sm:$0xff] %v170
  // Predicated region
  $region10: #{hourglass_forward.22} parent=0 // pred_check
    _
  $region11: #{hourglass_forward.22} parent=0 // pred_check_branch
    %177 = sbr.rel (0) target = $region13
  $region12: #{hourglass_forward.22} parent=0 // pred_region
    _
  $region13: #{hourglass_forward.22} parent=0 // pred_fallthru
    _
  // Predicated region
  $region14: #{hourglass_forward.22} parent=0 // pred_check
    _
  $region15: #{hourglass_forward.22} parent=0 // pred_check_branch
    %179 = sbr.rel (0) target = $region17
  $region16: #{hourglass_forward.22} parent=0 // pred_region
    _
  $region17: #{hourglass_forward.22} parent=0 // pred_fallthru
    _

// kernel: hourglass_forward.24
$region0: #{hourglass_forward.24}
  #allocation0 [shape = 'u32[]', space=smem, size = 0x4, offset = 0x4, fixed_abs, tag = 'smem constant byte address 0x4 - core index']
  #allocation1 [shape = 'u32[144,128]{1,0:T(1,128)}', space=vmem, size = 0x12000, scoped, tag = 'internal scratch']
  %s0 = inlined_call_operand.vmem [shape: bf16[1,8,216], index: 0, kind: input, shape index: {}]
  %s1 = inlined_call_operand.vmem [shape: bf16[1,216,16], index: 1, kind: input, shape index: {}]
  %s2 = inlined_call_operand.vmem [shape: f32[1,8,16], index: 2, kind: output, shape index: {}]
  %s3 = sld [smem:[#allocation0]]
  $region18: #{hourglass_forward.24} parent=0
    _
  %s5 = ssub.s32 1, %s3
  %s6 = scalar_select 0, %s5, %s3
  // Predicated region
  $region2: #{hourglass_forward.24} parent=0 // pred_check
    _
  $region3: #{hourglass_forward.24} parent=0 // pred_check_branch
    %8 = sbr.rel (0) target = $region5
  $region4: #{hourglass_forward.24} parent=0 // pred_region
    _
  $region5: #{hourglass_forward.24} parent=0 // pred_fallthru
    _
  // Predicated region
  $region6: #{hourglass_forward.24} parent=0 // pred_check
    _
  $region7: #{hourglass_forward.24} parent=0 // pred_check_branch
    %10 = sbr.rel (0) target = $region9
  $region8: #{hourglass_forward.24} parent=0 // pred_region
    _
  $region9: #{hourglass_forward.24} parent=0 // pred_fallthru
    _
  %v12 = vld [vmem:[%s0] sm:$0xff]
  %v13 = vld [vmem:[%s1] sm:$0xf]
  %v14 = vld [vmem:[%s1 + $0x4] sm:$0xf]
  %v15 = vld [vmem:[%s1 + $0x8] sm:$0xf]
  %v16 = vld [vmem:[%s1 + $0xc] sm:$0xf]
  %v17 = vld [vmem:[%s1 + $0x10] sm:$0xf]
  %v18 = vld [vmem:[%s1 + $0x14] sm:$0xf]
  %v19 = vld [vmem:[%s1 + $0x18] sm:$0xf]
  %v20 = vld [vmem:[%s1 + $0x1c] sm:$0xf]
  %v21 = vld [vmem:[%s1 + $0x20] sm:$0xf]
  %v22 = vld [vmem:[%s1 + $0x24] sm:$0xf]
  %v23 = vld [vmem:[%s1 + $0x28] sm:$0xf]
  %v24 = vld [vmem:[%s1 + $0x2c] sm:$0xf]
  %v25 = vld [vmem:[%s1 + $0x30] sm:$0xf]
  %v26 = vld [vmem:[%s1 + $0x34] sm:$0xf]
  %v27 = vld [vmem:[%s1 + $0x38] sm:$0xf]
  %v28 = vld [vmem:[%s1 + $0x3c] sm:$0xf]
  %v29 = vld [vmem:[%s1 + $0x40] sm:$0xf]
  %v30 = vld [vmem:[%s1 + $0x44] sm:$0xf]
  %v31 = vld [vmem:[%s1 + $0x48] sm:$0xf]
  %v32 = vld [vmem:[%s1 + $0x4c] sm:$0xf]
  %v33 = vld [vmem:[%s1 + $0x50] sm:$0xf]
  %v34 = vld [vmem:[%s1 + $0x54] sm:$0xf]
  %v35 = vld [vmem:[%s1 + $0x58] sm:$0xf]
  %v36 = vld [vmem:[%s1 + $0x5c] sm:$0xf]
  %v37 = vld [vmem:[%s1 + $0x60] sm:$0xf]
  %v38 = vld [vmem:[%s1 + $0x64] sm:$0xf]
  %v39 = vld [vmem:[%s1 + $0x68] sm:$0xf]
  %v41 = vunpack.c.l.b16 %v12
  %v42 = vunpack.c.h.b16 %v12
  %v43 = vpack.c.b16 %v41, %v41
  %v44 = vpack.c.b16 %v42, %v42
  %v73 = vunpack.c.l.b16 %v13
  %v74 = vunpack.c.l.b16 %v14
  %v75 = vunpack.c.l.b16 %v15
  %v76 = vunpack.c.l.b16 %v16
  %v77 = vunpack.c.l.b16 %v17
  %v78 = vunpack.c.l.b16 %v18
  %v79 = vunpack.c.l.b16 %v19
  %v80 = vunpack.c.l.b16 %v20
  %v81 = vunpack.c.l.b16 %v21
  %v82 = vunpack.c.l.b16 %v22
  %v83 = vunpack.c.l.b16 %v23
  %v84 = vunpack.c.l.b16 %v24
  %v85 = vunpack.c.l.b16 %v25
  %v86 = vunpack.c.l.b16 %v26
  %v87 = vunpack.c.l.b16 %v27
  %v88 = vunpack.c.l.b16 %v28
  %v89 = vunpack.c.l.b16 %v29
  %v90 = vunpack.c.l.b16 %v30
  %v91 = vunpack.c.l.b16 %v31
  %v92 = vunpack.c.l.b16 %v32
  %v93 = vunpack.c.l.b16 %v33
  %v94 = vunpack.c.l.b16 %v34
  %v95 = vunpack.c.l.b16 %v35
  %v96 = vunpack.c.l.b16 %v36
  %v97 = vunpack.c.l.b16 %v37
  %v98 = vunpack.c.l.b16 %v38
  %v99 = vunpack.c.l.b16 %v39
  %v100 = vpack.c.b16 %v74, %v73
  %v101 = vpack.c.b16 %v76, %v75
  %v102 = vpack.c.b16 %v78, %v77
  %v103 = vpack.c.b16 %v80, %v79
  %v104 = vpack.c.b16 %v82, %v81
  %v105 = vpack.c.b16 %v84, %v83
  %v106 = vpack.c.b16 %v86, %v85
  %v107 = vpack.c.b16 %v88, %v87
  %v108 = vpack.c.b16 %v90, %v89
  %v109 = vpack.c.b16 %v92, %v91
  %v110 = vpack.c.b16 %v94, %v93
  %v111 = vpack.c.b16 %v96, %v95
  %v112 = vpack.c.b16 %v98, %v97
  %v113 = vpack.c.b16 %v99, %v99
  %vm127 = vcmask 719872
  %v129 = vsel %vm127, %v44, 0
  %vm131 = vcmask 1043456
  %v133 = vsel %vm131, %v113, 0
  %135 = vmatprep.subr.bf16.mxu0 0
  %136 = vmatpush1.bf16.msra.mxu0 %v100
  %137 = vmatprep.subr.bf16.mxu0 0
  %138 = vmatpush1.bf16.msra.mxu0 %v101
  %139 = vmatprep.subr.bf16.mxu0 0
  %140 = vmatpush1.bf16.msra.mxu0 %v102
  %141 = vmatprep.subr.bf16.mxu0 0
  %142 = vmatpush1.bf16.msra.mxu0 %v103
  %143 = vmatprep.subr.bf16.mxu0 0
  %144 = vmatpush1.bf16.msra.mxu0 %v104
  %145 = vmatprep.subr.bf16.mxu0 0
  %146 = vmatpush1.bf16.msra.mxu0 %v105
  %147 = vmatprep.subr.bf16.mxu0 0
  %148 = vmatpush1.bf16.msra.mxu0 %v106
  %149 = vmatprep.subr.bf16.mxu0 0
  %150 = vmatpush1.bf16.msra.mxu0 %v107
  %151 = vmatprep.subr.bf16.mxu0 0
  %152 = vmatpush1.bf16.msra.mxu0 %v108
  %153 = vmatprep.subr.bf16.mxu0 0
  %154 = vmatpush1.bf16.msra.mxu0 %v109
  %155 = vmatprep.subr.bf16.mxu0 0
  %156 = vmatpush1.bf16.msra.mxu0 %v110
  %157 = vmatprep.subr.bf16.mxu0 0
  %158 = vmatpush1.bf16.msra.mxu0 %v111
  %159 = vmatprep.subr.bf16.mxu0 0
  %160 = vmatpush1.bf16.msra.mxu0 %v112
  %161 = vmatprep.subr.bf16.mxu0 0
  %162 = vmatpush1.bf16.msra.mxu0 %v133
  %163 = vmatprep.subr.bf16.mxu0 0
  %164 = vmatpush1.bf16.msra.mxu0 0
  %165 = vmatprep.subr.bf16.mxu0 0
  %166 = vmatpush1.bf16.msra.mxu0 0
  %167 = vmatprep.mubr.bf16.mxu0 %v129
  %168 = vmatmul.mubr.bf16.gmra.mrb[0].mxu0 %v43
  %v169 = vpop.f32.mrb[0].mxu0
  %v170 = vadd.f32 0.0, %v169
  %v171 = vpop.f32.mrb[0].mxu0
  %v172 = vpop.f32.mrb[0].mxu0
  %v173 = vpop.f32.mrb[0].mxu0
  %174 = vdwg.mxu0
  %vm175 = vcmask 130048
  %176 = vst.msk [vmem:[%s2] sm:$0xff] %vm175, %v170
  // Predicated region
  $region10: #{hourglass_forward.24} parent=0 // pred_check
    _
  $region11: #{hourglass_forward.24} parent=0 // pred_check_branch
    %178 = sbr.rel (0) target = $region13
  $region12: #{hourglass_forward.24} parent=0 // pred_region
    _
  $region13: #{hourglass_forward.24} parent=0 // pred_fallthru
    _
  // Predicated region
  $region14: #{hourglass_forward.24} parent=0 // pred_check
    _
  $region15: #{hourglass_forward.24} parent=0 // pred_check_branch
    %180 = sbr.rel (0) target = $region17
  $region16: #{hourglass_forward.24} parent=0 // pred_region
    _
  $region17: #{hourglass_forward.24} parent=0 // pred_fallthru
    _

// kernel: hourglass_forward.25
$region0: #{hourglass_forward.25}
  #allocation0 [shape = 'u32[]', space=smem, size = 0x4, offset = 0x4, fixed_abs, tag = 'smem constant byte address 0x4 - core index']
  #allocation1 [shape = 'u32[144,128]{1,0:T(1,128)}', space=vmem, size = 0x12000, scoped, tag = 'internal scratch']
  %s0 = inlined_call_operand.vmem [shape: f32[8,16], index: 0, kind: input, shape index: {}]
  %s1 = inlined_call_operand.vmem [shape: f32[8,1], index: 1, kind: input, shape index: {}]
  %s2 = inlined_call_operand.vmem [shape: f32[8,1], index: 2, kind: input, shape index: {}]
  %s3 = inlined_call_operand.vmem [shape: f32[8,16], index: 3, kind: output, shape index: {}]
  %s4 = sld [smem:[#allocation0]]
  $region22: #{hourglass_forward.25} parent=0
    _
  %s6 = ssub.s32 1, %s4
  %s7 = scalar_select 0, %s6, %s4
  // Predicated region
  $region2: #{hourglass_forward.25} parent=0 // pred_check
    _
  $region3: #{hourglass_forward.25} parent=0 // pred_check_branch
    %9 = sbr.rel (0) target = $region5
  $region4: #{hourglass_forward.25} parent=0 // pred_region
    _
  $region5: #{hourglass_forward.25} parent=0 // pred_fallthru
    _
  // Predicated region
  $region6: #{hourglass_forward.25} parent=0 // pred_check
    _
  $region7: #{hourglass_forward.25} parent=0 // pred_check_branch
    %11 = sbr.rel (0) target = $region9
  $region8: #{hourglass_forward.25} parent=0 // pred_region
    _
  $region9: #{hourglass_forward.25} parent=0 // pred_fallthru
    _
  // Predicated region
  $region10: #{hourglass_forward.25} parent=0 // pred_check
    _
  $region11: #{hourglass_forward.25} parent=0 // pred_check_branch
    %13 = sbr.rel (0) target = $region13
  $region12: #{hourglass_forward.25} parent=0 // pred_region
    _
  $region13: #{hourglass_forward.25} parent=0 // pred_fallthru
    _
  %v14 = vld [vmem:[%s0] sm:$0xff]
  %v15 = vld [vmem:[%s1] sm:$0xff]
  %17 = vset.pattern.permute.xlu0 0
  %18 = vperm.xlu0 %17, %v15
  %v19 = vpop.permute.xlu0 %18
  %v21 = vmul.f32 %v14, %v19
  %v22 = vld [vmem:[%s2] sm:$0xff]
  %24 = vset.pattern.permute.xlu0 0
  %25 = vperm.xlu0 %24, %v22
  %v26 = vpop.permute.xlu0 %25
  %v28 = vadd.f32 %v21, %v26
  %vm29 = vcmp.ge.f32.partialorder %v28, 0.0
  %v30 = vmul.f32 %v28, 0.2
  %v31 = vsel %vm29, %v28, %v30
  %vm32 = vcmask 130048
  %33 = vst.msk [vmem:[%s3] sm:$0xff] %vm32, %v31
  // Predicated region
  $region14: #{hourglass_forward.25} parent=0 // pred_check
    _
  $region15: #{hourglass_forward.25} parent=0 // pred_check_branch
    %35 = sbr.rel (0) target = $region17
  $region16: #{hourglass_forward.25} parent=0 // pred_region
    _
  $region17: #{hourglass_forward.25} parent=0 // pred_fallthru
    _
  // Predicated region
  $region18: #{hourglass_forward.25} parent=0 // pred_check
    _
  $region19: #{hourglass_forward.25} parent=0 // pred_check_branch
    %37 = sbr.rel (0) target = $region21
  $region20: #{hourglass_forward.25} parent=0 // pred_region
    _
  $region21: #{hourglass_forward.25} parent=0 // pred_fallthru
    _

// kernel: hourglass_forward.28
$region0: #{hourglass_forward.28}
  #allocation0 [shape = 'u32[]', space=smem, size = 0x4, offset = 0x4, fixed_abs, tag = 'smem constant byte address 0x4 - core index']
  #allocation1 [shape = 'u32[144,128]{1,0:T(1,128)}', space=vmem, size = 0x12000, scoped, tag = 'internal scratch']
  %s0 = inlined_call_operand.vmem [shape: bf16[8,8,64], index: 0, kind: input, shape index: {}]
  %s1 = inlined_call_operand.vmem [shape: bf16[8,64,16], index: 1, kind: input, shape index: {}]
  %s2 = inlined_call_operand.vmem [shape: f32[8,8,16], index: 2, kind: output, shape index: {}]
  %s3 = sld [smem:[#allocation0]]
  $region41: #{hourglass_forward.28} parent=0
    _
  %s5 = ssub.s32 1, %s3
  %s6 = scalar_select 0, %s5, %s3
  loop: start=0, step=1, limit=10
  $region2: #{hourglass_forward.28} parent=0 // loop_pre_header
    _
  $region3: #{hourglass_forward.28} parent=0 // loop_header
    %s8 = sphi 0, %s12
    %p9 = scmp.ge.s32.totalorder %s8, 10
    %s15 = sphi 0, %s27
    %s16 = sphi 0, %s23
    %s17 = sphi 0, %s15
    %s18 = sphi 0, %s16
    %s19 = sphi 0, %s17
    %s20 = sphi 0, %s18
    %s30 = sphi 0, %s32
    %s33 = sphi 0, %s30
    %s34 = sphi 0, %s33
    %s50 = sphi 0, %s34
    %s58 = sphi 0, %s60
    %s61 = sphi 0, %s58
    %s62 = sphi 0, %s61
    %s78 = sphi 0, %s62
    %s86 = sphi 0, %s88
    %s89 = sphi 0, %s86
    %s90 = sphi 0, %s89
    %s106 = sphi 0, %s90
  $region4: #{hourglass_forward.28} parent=0 // loop_header_branch
    %11 = sbr.rel (%p9) target = $region8
  $region5: #{hourglass_forward.28} parent=0 // loop_body
    %s13 = ssub.s32 %s8, 1
    %s14 = ssub.s32 %s8, 2
    %s21 = sadd.s32 1, %s16
    %p22 = scmp.ge.s32.totalorder %s21, 1
    %s23 = scalar_select %p22, 0, %s21
    %s24 = sadd.s32 1, %s15
    %s25 = scalar_select %p22, %s24, %s15
    %p26 = scmp.ge.s32.totalorder %s25, 8
    %s27 = scalar_select %p26, 0, %s25
    %s28 = ssub.s32 %s15, %s27
    %p29 = scmp.eq.s32.totalorder %s28, 0
    %s31 = sadd.s32 %s30, 1
    %s32 = scalar_select %p29, %s30, %s31
    %p35 = pneg %p29
    %p36 = scmp.eq.s32.totalorder %s8, 7
    %p37 = por %p35, %p36
    %p38 = scmp.ne.s32.totalorder %s30, %s33
    %p39 = scmp.eq.s32.totalorder %s8, 0
    %p40 = por %p38, %p39
    %p41 = scmp.ne.s32.totalorder %s30, %s33
    %p42 = scmp.eq.s32.totalorder %s13, 7
    %p43 = por %p41, %p42
    %p44 = scmp.ne.s32.totalorder %s33, %s34
    %p45 = scmp.eq.s32.totalorder %s13, 0
    %p46 = por %p44, %p45
    %p47 = scmp.ne.s32.totalorder %s33, %s34
    %p48 = scmp.eq.s32.totalorder %s14, 7
    %p49 = por %p47, %p48
    %p51 = scmp.ne.s32.totalorder %s34, %s50
    %p52 = scmp.eq.s32.totalorder %s14, 0
    %p53 = por %p51, %p52
    %s54 = ssub.s32 %s15, %s27
    %s55 = ssub.s32 %s16, %s23
    %s56 = sor.u32 %s54, %s55
    %p57 = scmp.eq.s32.totalorder %s56, 0
    %s59 = sadd.s32 %s58, 1
    %s60 = scalar_select %p57, %s58, %s59
    %p63 = pneg %p57
    %p64 = scmp.eq.s32.totalorder %s8, 7
    %p65 = por %p63, %p64
    %p66 = scmp.ne.s32.totalorder %s58, %s61
    %p67 = scmp.eq.s32.totalorder %s8, 0
    %p68 = por %p66, %p67
    %p69 = scmp.ne.s32.totalorder %s58, %s61
    %p70 = scmp.eq.s32.totalorder %s13, 7
    %p71 = por %p69, %p70
    %p72 = scmp.ne.s32.totalorder %s61, %s62
    %p73 = scmp.eq.s32.totalorder %s13, 0
    %p74 = por %p72, %p73
    %p75 = scmp.ne.s32.totalorder %s61, %s62
    %p76 = scmp.eq.s32.totalorder %s14, 7
    %p77 = por %p75, %p76
    %p79 = scmp.ne.s32.totalorder %s62, %s78
    %p80 = scmp.eq.s32.totalorder %s14, 0
    %p81 = por %p79, %p80
    %s82 = ssub.s32 %s15, %s27
    %s83 = ssub.s32 %s16, %s23
    %s84 = sor.u32 %s82, %s83
    %p85 = scmp.eq.s32.totalorder %s84, 0
    %s87 = sadd.s32 %s86, 1
    %s88 = scalar_select %p85, %s86, %s87
    %p91 = pneg %p85
    %p92 = scmp.eq.s32.totalorder %s8, 7
    %p93 = por %p91, %p92
    %p94 = scmp.ne.s32.totalorder %s86, %s89
    %p95 = scmp.eq.s32.totalorder %s8, 0
    %p96 = por %p94, %p95
    %p97 = scmp.ne.s32.totalorder %s86, %s89
    %p98 = scmp.eq.s32.totalorder %s13, 7
    %p99 = por %p97, %p98
    %p100 = scmp.ne.s32.totalorder %s89, %s90
    %p101 = scmp.eq.s32.totalorder %s13, 0
    %p102 = por %p100, %p101
    %p103 = scmp.ne.s32.totalorder %s89, %s90
    %p104 = scmp.eq.s32.totalorder %s14, 7
    %p105 = por %p103, %p104
    %p107 = scmp.ne.s32.totalorder %s90, %s106
    %p108 = scmp.eq.s32.totalorder %s14, 0
    %p109 = por %p107, %p108
    %p110 = scmp.le.s32.totalorder 1, %s8
    %p111 = scmp.lt.s32.totalorder %s8, 9
    %p112 = pnand %p110, %p111
    %p113 = pneg %p112
    // Predicated region
    $region9: #{hourglass_forward.28} parent=5 // pred_check
      _
    $region10: #{hourglass_forward.28} parent=5 // pred_check_branch
      %115 = sbr.rel (%p112) target = $region12
    $region11: #{hourglass_forward.28} parent=5 // pred_region
      %s116 = ssub.s32 %s8, 1
    $region12: #{hourglass_forward.28} parent=5 // pred_fallthru
      _
    %p117 = scmp.lt.s32.totalorder %s8, 8
    // Predicated region
    $region13: #{hourglass_forward.28} parent=5 // pred_check
      %p118 = pneg %p117
    $region14: #{hourglass_forward.28} parent=5 // pred_check_branch
      %120 = sbr.rel (%p118) target = $region16
    $region15: #{hourglass_forward.28} parent=5 // pred_region
      // Predicated region
      $region17: #{hourglass_forward.28} parent=15 // pred_check
        %p121 = pneg %p40
      $region18: #{hourglass_forward.28} parent=15 // pred_check_branch
        %123 = sbr.rel (%p121) target = $region20
      $region19: #{hourglass_forward.28} parent=15 // pred_region
        %p124 = scmp.lt.s32.totalorder %s15, 7
        %s125 = scalar_select %p124, %s15, 7
        %s126 = smul.addr %s125, 4
        %s127 = scalar_lea.vmem %s0, %s126
      $region20: #{hourglass_forward.28} parent=15 // pred_fallthru
        _
      // Predicated region
      $region21: #{hourglass_forward.28} parent=15 // pred_check
        %p128 = pneg %p68
      $region22: #{hourglass_forward.28} parent=15 // pred_check_branch
        %130 = sbr.rel (%p128) target = $region24
      $region23: #{hourglass_forward.28} parent=15 // pred_region
        %p131 = scmp.lt.s32.totalorder %s15, 7
        %s132 = scalar_select %p131, %s15, 7
        %p133 = scmp.lt.s32.totalorder %s16, 0
        %s134 = scalar_select %p133, %s16, 0
        %s135 = smul.addr %s132, 8
        %s136 = sadd.s32 %s134, %s135
        %s137 = smul.addr %s136, 4
        %s138 = scalar_lea.vmem %s1, %s137
      $region24: #{hourglass_forward.28} parent=15 // pred_fallthru
        _
    $region16: #{hourglass_forward.28} parent=5 // pred_fallthru
      _
    %p139 = scmp.le.s32.totalorder 1, %s8
    %p140 = scmp.lt.s32.totalorder %s8, 9
    %p141 = pnand %p139, %p140
    %p142 = pneg %p141
    // Predicated region
    $region25: #{hourglass_forward.28} parent=5 // pred_check
      _
    $region26: #{hourglass_forward.28} parent=5 // pred_check_branch
      %144 = sbr.rel (%p141) target = $region28
    $region27: #{hourglass_forward.28} parent=5 // pred_region
      %s145 = ssub.s32 %s8, 1
      %p146 = scmp.lt.s32.totalorder %s17, 7
      %s147 = scalar_select %p146, %s17, 7
      %s148 = smul.addr %s147, 4
      %s149 = scalar_lea.vmem %s0, %s148
      %p150 = pneg %p46
      %p151 = pneg %p43
      %p152 = scmp.lt.s32.totalorder %s17, 7
      %s153 = scalar_select %p152, %s17, 7
      %p154 = scmp.lt.s32.totalorder %s18, 0
      %s155 = scalar_select %p154, %s18, 0
      %s156 = smul.addr %s153, 8
      %s157 = sadd.s32 %s155, %s156
      %s158 = smul.addr %s157, 4
      %s159 = scalar_lea.vmem %s1, %s158
      %p160 = pneg %p74
      %p161 = pneg %p71
      %p162 = pneg %p102
      %p163 = pneg %p99
      %p164 = scmp.lt.s32.totalorder %s17, 7
      %s165 = scalar_select %p164, %s17, 7
      %p166 = scmp.lt.s32.totalorder %s18, 0
      %s167 = scalar_select %p166, %s18, 0
      %s168 = sadd.s32 %s167, %s165
      %s169 = smul.addr %s168, 8
      %s170 = scalar_lea.vmem %s2, %s169
      %p171 = scmp.lt.s32.totalorder %s17, 7
      %s172 = scalar_select %p171, %s17, 7
      %s173 = smul.addr %s172, 4
      %s174 = scalar_lea.vmem %s0, %s173
      %p175 = scmp.lt.s32.totalorder %s17, 7
      %s176 = scalar_select %p175, %s17, 7
      %p177 = scmp.lt.s32.totalorder %s18, 0
      %s178 = scalar_select %p177, %s18, 0
      %s179 = smul.addr %s176, 8
      %s180 = sadd.s32 %s178, %s179
      %s181 = smul.addr %s180, 4
      %s182 = scalar_lea.vmem %s1, %s181
      %p183 = scmp.lt.s32.totalorder %s17, 7
      %s184 = scalar_select %p183, %s17, 7
      %p185 = scmp.lt.s32.totalorder %s18, 0
      %s186 = scalar_select %p185, %s18, 0
      %s187 = sadd.s32 %s186, %s184
      %s188 = smul.addr %s187, 8
      %s189 = scalar_lea.vmem %s2, %s188
      %v191 = vld [vmem:[%s174] sm:$0xf]
      %v192 = vld [vmem:[%s182] sm:$0xf]
      %v193 = vld [vmem:[%s182 + $0x4] sm:$0xf]
      %v194 = vld [vmem:[%s182 + $0x8] sm:$0xf]
      %v195 = vld [vmem:[%s182 + $0xc] sm:$0xf]
      %v196 = vld [vmem:[%s182 + $0x10] sm:$0xf]
      %v197 = vld [vmem:[%s182 + $0x14] sm:$0xf]
      %v198 = vld [vmem:[%s182 + $0x18] sm:$0xf]
      %v199 = vld [vmem:[%s182 + $0x1c] sm:$0xf]
      %v208 = vunpack.c.l.b16 %v192
      %v209 = vunpack.c.l.b16 %v193
      %v210 = vunpack.c.l.b16 %v194
      %v211 = vunpack.c.l.b16 %v195
      %v212 = vunpack.c.l.b16 %v196
      %v213 = vunpack.c.l.b16 %v197
      %v214 = vunpack.c.l.b16 %v198
      %v215 = vunpack.c.l.b16 %v199
      %v216 = vpack.c.b16 %v209, %v208
      %v217 = vpack.c.b16 %v211, %v210
      %v218 = vpack.c.b16 %v213, %v212
      %v219 = vpack.c.b16 %v215, %v214
      %vm224 = vcmask 523264
      %v226 = vsel %vm224, %v191, 0
      %228 = vmatprep.subr.bf16.mxu0 0
      %229 = vmatpush1.bf16.msra.mxu0 %v216
      %230 = vmatprep.subr.bf16.mxu0 0
      %231 = vmatpush1.bf16.msra.mxu0 %v217
      %232 = vmatprep.subr.bf16.mxu0 0
      %233 = vmatpush1.bf16.msra.mxu0 %v218
      %234 = vmatprep.subr.bf16.mxu0 0
      %235 = vmatpush1.bf16.msra.mxu0 %v219
      %236 = vmatprep.subr.bf16.mxu0 0
      %237 = vmatpush1.bf16.msra.mxu0 0
      %238 = vmatprep.subr.bf16.mxu0 0
      %239 = vmatpush1.bf16.msra.mxu0 0
      %240 = vmatprep.subr.bf16.mxu0 0
      %241 = vmatpush1.bf16.msra.mxu0 0
      %242 = vmatprep.subr.bf16.mxu0 0
      %243 = vmatpush1.bf16.msra.mxu0 0
      %244 = vmatprep.subr.bf16.mxu0 0
      %245 = vmatpush1.bf16.msra.mxu0 0
      %246 = vmatprep.subr.bf16.mxu0 0
      %247 = vmatpush1.bf16.msra.mxu0 0
      %248 = vmatprep.subr.bf16.mxu0 0
      %249 = vmatpush1.bf16.msra.mxu0 0
      %250 = vmatprep.subr.bf16.mxu0 0
      %251 = vmatpush1.bf16.msra.mxu0 0
      %252 = vmatprep.subr.bf16.mxu0 0
      %253 = vmatpush1.bf16.msra.mxu0 0
      %254 = vmatprep.subr.bf16.mxu0 0
      %255 = vmatpush1.bf16.msra.mxu0 0
      %256 = vmatprep.subr.bf16.mxu0 0
      %257 = vmatpush1.bf16.msra.mxu0 0
      %258 = vmatprep.subr.bf16.mxu0 0
      %259 = vmatpush1.bf16.msra.mxu0 0
      %260 = vmatprep.mubr.bf16.mxu0 0
      %261 = vmatmul.mubr.bf16.gmra.mrb[0].mxu0 %v226
      %v262 = vpop.f32.mrb[0].mxu0
      %v263 = vadd.f32 0.0, %v262
      %v264 = vpop.f32.mrb[0].mxu0
      %v265 = vpop.f32.mrb[0].mxu0
      %v266 = vpop.f32.mrb[0].mxu0
      %267 = vdwg.mxu0
      %vm268 = vcmask 130048
      %269 = vst.msk [vmem:[%s189] sm:$0xff] %vm268, %v263
      %p270 = scmp.lt.s32.totalorder %s17, 7
      %s271 = scalar_select %p270, %s17, 7
      %p272 = scmp.lt.s32.totalorder %s18, 0
      %s273 = scalar_select %p272, %s18, 0
      %s274 = sadd.s32 %s273, %s271
      %s275 = smul.addr %s274, 8
      %s276 = scalar_lea.vmem %s2, %s275
      // Predicated region
      $region29: #{hourglass_forward.28} parent=27 // pred_check
        %p277 = pneg %p99
      $region30: #{hourglass_forward.28} parent=27 // pred_check_branch
        %279 = sbr.rel (%p277) target = $region32
      $region31: #{hourglass_forward.28} parent=27 // pred_region
        _
      $region32: #{hourglass_forward.28} parent=27 // pred_fallthru
        _
    $region28: #{hourglass_forward.28} parent=5 // pred_fallthru
      _
    %p280 = scmp.le.s32.totalorder 2, %s8
    // Predicated region
    $region33: #{hourglass_forward.28} parent=5 // pred_check
      %p281 = pneg %p280
    $region34: #{hourglass_forward.28} parent=5 // pred_check_branch
      %283 = sbr.rel (%p281) target = $region36
    $region35: #{hourglass_forward.28} parent=5 // pred_region
      %s284 = ssub.s32 %s8, 2
      // Predicated region
      $region37: #{hourglass_forward.28} parent=35 // pred_check
        %p285 = pneg %p105
      $region38: #{hourglass_forward.28} parent=35 // pred_check_branch
        %287 = sbr.rel (%p285) target = $region40
      $region39: #{hourglass_forward.28} parent=35 // pred_region
        %p288 = scmp.lt.s32.totalorder %s19, 7
        %s289 = scalar_select %p288, %s19, 7
        %p290 = scmp.lt.s32.totalorder %s20, 0
        %s291 = scalar_select %p290, %s20, 0
        %s292 = sadd.s32 %s291, %s289
        %s293 = smul.addr %s292, 8
        %s294 = scalar_lea.vmem %s2, %s293
      $region40: #{hourglass_forward.28} parent=35 // pred_fallthru
        _
    $region36: #{hourglass_forward.28} parent=5 // pred_fallthru
      _
  $region6: #{hourglass_forward.28} parent=0 // loop_footer
    %s12 = sadd.s32 1, %s8
  $region7: #{hourglass_forward.28} parent=0 // loop_footer_branch
    %7 = sbr.rel target = $region3
  $region8: #{hourglass_forward.28} parent=0 // loop_exit
    _

// kernel: hourglass_forward.29
$region0: #{hourglass_forward.29}
  #allocation0 [shape = 'u32[]', space=smem, size = 0x4, offset = 0x4, fixed_abs, tag = 'smem constant byte address 0x4 - core index']
  #allocation1 [shape = 'u32[144,128]{1,0:T(1,128)}', space=vmem, size = 0x12000, scoped, tag = 'internal scratch']
  %s0 = inlined_call_operand.vmem [shape: f32[8,128], index: 0, kind: input, shape index: {}]
  %s1 = inlined_call_operand.vmem [shape: f32[8,1], index: 1, kind: input, shape index: {}]
  %s2 = inlined_call_operand.vmem [shape: f32[8,1], index: 2, kind: input, shape index: {}]
  %s3 = inlined_call_operand.vmem [shape: f32[8,128], index: 3, kind: input, shape index: {}]
  %s4 = inlined_call_operand.vmem [shape: f32[8,128], index: 4, kind: output, shape index: {}]
  %s5 = sld [smem:[#allocation0]]
  $region26: #{hourglass_forward.29} parent=0
    _
  %s7 = ssub.s32 1, %s5
  %s8 = scalar_select 0, %s7, %s5
  // Predicated region
  $region2: #{hourglass_forward.29} parent=0 // pred_check
    _
  $region3: #{hourglass_forward.29} parent=0 // pred_check_branch
    %10 = sbr.rel (0) target = $region5
  $region4: #{hourglass_forward.29} parent=0 // pred_region
    _
  $region5: #{hourglass_forward.29} parent=0 // pred_fallthru
    _
  // Predicated region
  $region6: #{hourglass_forward.29} parent=0 // pred_check
    _
  $region7: #{hourglass_forward.29} parent=0 // pred_check_branch
    %12 = sbr.rel (0) target = $region9
  $region8: #{hourglass_forward.29} parent=0 // pred_region
    _
  $region9: #{hourglass_forward.29} parent=0 // pred_fallthru
    _
  // Predicated region
  $region10: #{hourglass_forward.29} parent=0 // pred_check
    _
  $region11: #{hourglass_forward.29} parent=0 // pred_check_branch
    %14 = sbr.rel (0) target = $region13
  $region12: #{hourglass_forward.29} parent=0 // pred_region
    _
  $region13: #{hourglass_forward.29} parent=0 // pred_fallthru
    _
  // Predicated region
  $region14: #{hourglass_forward.29} parent=0 // pred_check
    _
  $region15: #{hourglass_forward.29} parent=0 // pred_check_branch
    %16 = sbr.rel (0) target = $region17
  $region16: #{hourglass_forward.29} parent=0 // pred_region
    _
  $region17: #{hourglass_forward.29} parent=0 // pred_fallthru
    _
  %v17 = vld [vmem:[%s0] sm:$0xff]
  %v18 = vld [vmem:[%s1] sm:$0xff]
  %20 = vset.pattern.permute.xlu0 0
  %21 = vperm.xlu0 %20, %v18
  %v22 = vpop.permute.xlu0 %21
  %v24 = vmul.f32 %v17, %v22
  %v25 = vld [vmem:[%s2] sm:$0xff]
  %27 = vset.pattern.permute.xlu0 0
  %28 = vperm.xlu0 %27, %v25
  %v29 = vpop.permute.xlu0 %28
  %v31 = vadd.f32 %v24, %v29
  %vm32 = vcmp.ge.f32.partialorder %v31, 0.0
  %v33 = vmul.f32 %v31, 0.2
  %v34 = vsel %vm32, %v31, %v33
  %v35 = vld [vmem:[%s3] sm:$0xff]
  %v36 = vadd.f32 %v34, %v35
  %37 = vst [vmem:[%s4] sm:$0xff] %v36
  // Predicated region
  $region18: #{hourglass_forward.29} parent=0 // pred_check
    _
  $region19: #{hourglass_forward.29} parent=0 // pred_check_branch
    %39 = sbr.rel (0) target = $region21
  $region20: #{hourglass_forward.29} parent=0 // pred_region
    _
  $region21: #{hourglass_forward.29} parent=0 // pred_fallthru
    _
  // Predicated region
  $region22: #{hourglass_forward.29} parent=0 // pred_check
    _
  $region23: #{hourglass_forward.29} parent=0 // pred_check_branch
    %41 = sbr.rel (0) target = $region25
  $region24: #{hourglass_forward.29} parent=0 // pred_region
    _
  $region25: #{hourglass_forward.29} parent=0 // pred_fallthru
    _

// kernel: hourglass_forward.30
$region0: #{hourglass_forward.30}
  #allocation0 [shape = 'u32[]', space=smem, size = 0x4, offset = 0x4, fixed_abs, tag = 'smem constant byte address 0x4 - core index']
  #allocation1 [shape = 'u32[144,128]{1,0:T(1,128)}', space=vmem, size = 0x12000, scoped, tag = 'internal scratch']
  %s0 = inlined_call_operand.vmem [shape: bf16[8,4,64], index: 0, kind: input, shape index: {}]
  %s1 = inlined_call_operand.vmem [shape: bf16[8,64,128], index: 1, kind: input, shape index: {}]
  %s2 = inlined_call_operand.vmem [shape: f32[8,4,128], index: 2, kind: output, shape index: {}]
  %s3 = sld [smem:[#allocation0]]
  $region41: #{hourglass_forward.30} parent=0
    _
  %s5 = ssub.s32 1, %s3
  %s6 = scalar_select 0, %s5, %s3
  loop: start=0, step=1, limit=10
  $region2: #{hourglass_forward.30} parent=0 // loop_pre_header
    _
  $region3: #{hourglass_forward.30} parent=0 // loop_header
    %s8 = sphi 0, %s12
    %p9 = scmp.ge.s32.totalorder %s8, 10
    %s15 = sphi 0, %s27
    %s16 = sphi 0, %s23
    %s17 = sphi 0, %s15
    %s18 = sphi 0, %s16
    %s19 = sphi 0, %s17
    %s20 = sphi 0, %s18
    %s30 = sphi 0, %s32
    %s33 = sphi 0, %s30
    %s34 = sphi 0, %s33
    %s50 = sphi 0, %s34
    %s58 = sphi 0, %s60
    %s61 = sphi 0, %s58
    %s62 = sphi 0, %s61
    %s78 = sphi 0, %s62
    %s86 = sphi 0, %s88
    %s89 = sphi 0, %s86
    %s90 = sphi 0, %s89
    %s106 = sphi 0, %s90
  $region4: #{hourglass_forward.30} parent=0 // loop_header_branch
    %11 = sbr.rel (%p9) target = $region8
  $region5: #{hourglass_forward.30} parent=0 // loop_body
    %s13 = ssub.s32 %s8, 1
    %s14 = ssub.s32 %s8, 2
    %s21 = sadd.s32 1, %s16
    %p22 = scmp.ge.s32.totalorder %s21, 1
    %s23 = scalar_select %p22, 0, %s21
    %s24 = sadd.s32 1, %s15
    %s25 = scalar_select %p22, %s24, %s15
    %p26 = scmp.ge.s32.totalorder %s25, 8
    %s27 = scalar_select %p26, 0, %s25
    %s28 = ssub.s32 %s15, %s27
    %p29 = scmp.eq.s32.totalorder %s28, 0
    %s31 = sadd.s32 %s30, 1
    %s32 = scalar_select %p29, %s30, %s31
    %p35 = pneg %p29
    %p36 = scmp.eq.s32.totalorder %s8, 7
    %p37 = por %p35, %p36
    %p38 = scmp.ne.s32.totalorder %s30, %s33
    %p39 = scmp.eq.s32.totalorder %s8, 0
    %p40 = por %p38, %p39
    %p41 = scmp.ne.s32.totalorder %s30, %s33
    %p42 = scmp.eq.s32.totalorder %s13, 7
    %p43 = por %p41, %p42
    %p44 = scmp.ne.s32.totalorder %s33, %s34
    %p45 = scmp.eq.s32.totalorder %s13, 0
    %p46 = por %p44, %p45
    %p47 = scmp.ne.s32.totalorder %s33, %s34
    %p48 = scmp.eq.s32.totalorder %s14, 7
    %p49 = por %p47, %p48
    %p51 = scmp.ne.s32.totalorder %s34, %s50
    %p52 = scmp.eq.s32.totalorder %s14, 0
    %p53 = por %p51, %p52
    %s54 = ssub.s32 %s15, %s27
    %s55 = ssub.s32 %s16, %s23
    %s56 = sor.u32 %s54, %s55
    %p57 = scmp.eq.s32.totalorder %s56, 0
    %s59 = sadd.s32 %s58, 1
    %s60 = scalar_select %p57, %s58, %s59
    %p63 = pneg %p57
    %p64 = scmp.eq.s32.totalorder %s8, 7
    %p65 = por %p63, %p64
    %p66 = scmp.ne.s32.totalorder %s58, %s61
    %p67 = scmp.eq.s32.totalorder %s8, 0
    %p68 = por %p66, %p67
    %p69 = scmp.ne.s32.totalorder %s58, %s61
    %p70 = scmp.eq.s32.totalorder %s13, 7
    %p71 = por %p69, %p70
    %p72 = scmp.ne.s32.totalorder %s61, %s62
    %p73 = scmp.eq.s32.totalorder %s13, 0
    %p74 = por %p72, %p73
    %p75 = scmp.ne.s32.totalorder %s61, %s62
    %p76 = scmp.eq.s32.totalorder %s14, 7
    %p77 = por %p75, %p76
    %p79 = scmp.ne.s32.totalorder %s62, %s78
    %p80 = scmp.eq.s32.totalorder %s14, 0
    %p81 = por %p79, %p80
    %s82 = ssub.s32 %s15, %s27
    %s83 = ssub.s32 %s16, %s23
    %s84 = sor.u32 %s82, %s83
    %p85 = scmp.eq.s32.totalorder %s84, 0
    %s87 = sadd.s32 %s86, 1
    %s88 = scalar_select %p85, %s86, %s87
    %p91 = pneg %p85
    %p92 = scmp.eq.s32.totalorder %s8, 7
    %p93 = por %p91, %p92
    %p94 = scmp.ne.s32.totalorder %s86, %s89
    %p95 = scmp.eq.s32.totalorder %s8, 0
    %p96 = por %p94, %p95
    %p97 = scmp.ne.s32.totalorder %s86, %s89
    %p98 = scmp.eq.s32.totalorder %s13, 7
    %p99 = por %p97, %p98
    %p100 = scmp.ne.s32.totalorder %s89, %s90
    %p101 = scmp.eq.s32.totalorder %s13, 0
    %p102 = por %p100, %p101
    %p103 = scmp.ne.s32.totalorder %s89, %s90
    %p104 = scmp.eq.s32.totalorder %s14, 7
    %p105 = por %p103, %p104
    %p107 = scmp.ne.s32.totalorder %s90, %s106
    %p108 = scmp.eq.s32.totalorder %s14, 0
    %p109 = por %p107, %p108
    %p110 = scmp.le.s32.totalorder 1, %s8
    %p111 = scmp.lt.s32.totalorder %s8, 9
    %p112 = pnand %p110, %p111
    %p113 = pneg %p112
    // Predicated region
    $region9: #{hourglass_forward.30} parent=5 // pred_check
      _
    $region10: #{hourglass_forward.30} parent=5 // pred_check_branch
      %115 = sbr.rel (%p112) target = $region12
    $region11: #{hourglass_forward.30} parent=5 // pred_region
      %s116 = ssub.s32 %s8, 1
    $region12: #{hourglass_forward.30} parent=5 // pred_fallthru
      _
    %p117 = scmp.lt.s32.totalorder %s8, 8
    // Predicated region
    $region13: #{hourglass_forward.30} parent=5 // pred_check
      %p118 = pneg %p117
    $region14: #{hourglass_forward.30} parent=5 // pred_check_branch
      %120 = sbr.rel (%p118) target = $region16
    $region15: #{hourglass_forward.30} parent=5 // pred_region
      // Predicated region
      $region17: #{hourglass_forward.30} parent=15 // pred_check
        %p121 = pneg %p40
      $region18: #{hourglass_forward.30} parent=15 // pred_check_branch
        %123 = sbr.rel (%p121) target = $region20
      $region19: #{hourglass_forward.30} parent=15 // pred_region
        %p124 = scmp.lt.s32.totalorder %s15, 7
        %s125 = scalar_select %p124, %s15, 7
        %s126 = smul.addr %s125, 2
        %s127 = scalar_lea.vmem %s0, %s126
      $region20: #{hourglass_forward.30} parent=15 // pred_fallthru
        _
      // Predicated region
      $region21: #{hourglass_forward.30} parent=15 // pred_check
        %p128 = pneg %p68
      $region22: #{hourglass_forward.30} parent=15 // pred_check_branch
        %130 = sbr.rel (%p128) target = $region24
      $region23: #{hourglass_forward.30} parent=15 // pred_region
        %p131 = scmp.lt.s32.totalorder %s15, 7
        %s132 = scalar_select %p131, %s15, 7
        %p133 = scmp.lt.s32.totalorder %s16, 0
        %s134 = scalar_select %p133, %s16, 0
        %s135 = smul.addr %s132, 8
        %s136 = sadd.s32 %s134, %s135
        %s137 = smul.addr %s136, 4
        %s138 = scalar_lea.vmem %s1, %s137
      $region24: #{hourglass_forward.30} parent=15 // pred_fallthru
        _
    $region16: #{hourglass_forward.30} parent=5 // pred_fallthru
      _
    %p139 = scmp.le.s32.totalorder 1, %s8
    %p140 = scmp.lt.s32.totalorder %s8, 9
    %p141 = pnand %p139, %p140
    %p142 = pneg %p141
    // Predicated region
    $region25: #{hourglass_forward.30} parent=5 // pred_check
      _
    $region26: #{hourglass_forward.30} parent=5 // pred_check_branch
      %144 = sbr.rel (%p141) target = $region28
    $region27: #{hourglass_forward.30} parent=5 // pred_region
      %s145 = ssub.s32 %s8, 1
      %p146 = scmp.lt.s32.totalorder %s17, 7
      %s147 = scalar_select %p146, %s17, 7
      %s148 = smul.addr %s147, 2
      %s149 = scalar_lea.vmem %s0, %s148
      %p150 = pneg %p46
      %p151 = pneg %p43
      %p152 = scmp.lt.s32.totalorder %s17, 7
      %s153 = scalar_select %p152, %s17, 7
      %p154 = scmp.lt.s32.totalorder %s18, 0
      %s155 = scalar_select %p154, %s18, 0
      %s156 = smul.addr %s153, 8
      %s157 = sadd.s32 %s155, %s156
      %s158 = smul.addr %s157, 4
      %s159 = scalar_lea.vmem %s1, %s158
      %p160 = pneg %p74
      %p161 = pneg %p71
      %p162 = pneg %p102
      %p163 = pneg %p99
      %p164 = scmp.lt.s32.totalorder %s17, 7
      %s165 = scalar_select %p164, %s17, 7
      %p166 = scmp.lt.s32.totalorder %s18, 0
      %s167 = scalar_select %p166, %s18, 0
      %s168 = sadd.s32 %s167, %s165
      %s169 = smul.addr %s168, 4
      %s170 = scalar_lea.vmem %s2, %s169
      %p171 = scmp.lt.s32.totalorder %s17, 7
      %s172 = scalar_select %p171, %s17, 7
      %s173 = smul.addr %s172, 2
      %s174 = scalar_lea.vmem %s0, %s173
      %p175 = scmp.lt.s32.totalorder %s17, 7
      %s176 = scalar_select %p175, %s17, 7
      %p177 = scmp.lt.s32.totalorder %s18, 0
      %s178 = scalar_select %p177, %s18, 0
      %s179 = smul.addr %s176, 8
      %s180 = sadd.s32 %s178, %s179
      %s181 = smul.addr %s180, 4
      %s182 = scalar_lea.vmem %s1, %s181
      %p183 = scmp.lt.s32.totalorder %s17, 7
      %s184 = scalar_select %p183, %s17, 7
      %p185 = scmp.lt.s32.totalorder %s18, 0
      %s186 = scalar_select %p185, %s18, 0
      %s187 = sadd.s32 %s186, %s184
      %s188 = smul.addr %s187, 4
      %s189 = scalar_lea.vmem %s2, %s188
      %v191 = vld [vmem:[%s174] sm:$0x3]
      %v192 = vld [vmem:[%s182] sm:$0xf]
      %v193 = vld [vmem:[%s182 + $0x4] sm:$0xf]
      %v194 = vld [vmem:[%s182 + $0x8] sm:$0xf]
      %v195 = vld [vmem:[%s182 + $0xc] sm:$0xf]
      %v196 = vld [vmem:[%s182 + $0x10] sm:$0xf]
      %v197 = vld [vmem:[%s182 + $0x14] sm:$0xf]
      %v198 = vld [vmem:[%s182 + $0x18] sm:$0xf]
      %v199 = vld [vmem:[%s182 + $0x1c] sm:$0xf]
      %v208 = vunpack.c.l.b16 %v192
      %v209 = vunpack.c.l.b16 %v193
      %v210 = vunpack.c.l.b16 %v194
      %v211 = vunpack.c.l.b16 %v195
      %v212 = vunpack.c.l.b16 %v196
      %v213 = vunpack.c.l.b16 %v197
      %v214 = vunpack.c.l.b16 %v198
      %v215 = vunpack.c.l.b16 %v199
      %v216 = vpack.c.b16 %v209, %v208
      %v217 = vpack.c.b16 %v211, %v210
      %v218 = vpack.c.b16 %v213, %v212
      %v219 = vpack.c.b16 %v215, %v214
      %vm224 = vcmask 523264
      %v226 = vsel %vm224, %v191, 0
      %228 = vmatprep.subr.bf16.mxu0 0
      %229 = vmatpush1.bf16.msra.mxu0 %v216
      %230 = vmatprep.subr.bf16.mxu0 0
      %231 = vmatpush1.bf16.msra.mxu0 %v217
      %232 = vmatprep.subr.bf16.mxu0 0
      %233 = vmatpush1.bf16.msra.mxu0 %v218
      %234 = vmatprep.subr.bf16.mxu0 0
      %235 = vmatpush1.bf16.msra.mxu0 %v219
      %236 = vmatprep.subr.bf16.mxu0 0
      %237 = vmatpush1.bf16.msra.mxu0 0
      %238 = vmatprep.subr.bf16.mxu0 0
      %239 = vmatpush1.bf16.msra.mxu0 0
      %240 = vmatprep.subr.bf16.mxu0 0
      %241 = vmatpush1.bf16.msra.mxu0 0
      %242 = vmatprep.subr.bf16.mxu0 0
      %243 = vmatpush1.bf16.msra.mxu0 0
      %244 = vmatprep.subr.bf16.mxu0 0
      %245 = vmatpush1.bf16.msra.mxu0 0
      %246 = vmatprep.subr.bf16.mxu0 0
      %247 = vmatpush1.bf16.msra.mxu0 0
      %248 = vmatprep.subr.bf16.mxu0 0
      %249 = vmatpush1.bf16.msra.mxu0 0
      %250 = vmatprep.subr.bf16.mxu0 0
      %251 = vmatpush1.bf16.msra.mxu0 0
      %252 = vmatprep.subr.bf16.mxu0 0
      %253 = vmatpush1.bf16.msra.mxu0 0
      %254 = vmatprep.subr.bf16.mxu0 0
      %255 = vmatpush1.bf16.msra.mxu0 0
      %256 = vmatprep.subr.bf16.mxu0 0
      %257 = vmatpush1.bf16.msra.mxu0 0
      %258 = vmatprep.subr.bf16.mxu0 0
      %259 = vmatpush1.bf16.msra.mxu0 0
      %260 = vmatprep.mubr.bf16.mxu0 0
      %261 = vmatmul.mubr.bf16.gmra.mrb[0].mxu0 %v226
      %v262 = vpop.f32.mrb[0].mxu0
      %v263 = vadd.f32 0.0, %v262
      %v264 = vpop.f32.mrb[0].mxu0
      %v265 = vpop.f32.mrb[0].mxu0
      %v266 = vpop.f32.mrb[0].mxu0
      %267 = vdwg.mxu0
      %268 = vst [vmem:[%s189] sm:$0xf] %v263
      %p269 = scmp.lt.s32.totalorder %s17, 7
      %s270 = scalar_select %p269, %s17, 7
      %p271 = scmp.lt.s32.totalorder %s18, 0
      %s272 = scalar_select %p271, %s18, 0
      %s273 = sadd.s32 %s272, %s270
      %s274 = smul.addr %s273, 4
      %s275 = scalar_lea.vmem %s2, %s274
      // Predicated region
      $region29: #{hourglass_forward.30} parent=27 // pred_check
        %p276 = pneg %p99
      $region30: #{hourglass_forward.30} parent=27 // pred_check_branch
        %278 = sbr.rel (%p276) target = $region32
      $region31: #{hourglass_forward.30} parent=27 // pred_region
        _
      $region32: #{hourglass_forward.30} parent=27 // pred_fallthru
        _
    $region28: #{hourglass_forward.30} parent=5 // pred_fallthru
      _
    %p279 = scmp.le.s32.totalorder 2, %s8
    // Predicated region
    $region33: #{hourglass_forward.30} parent=5 // pred_check
      %p280 = pneg %p279
    $region34: #{hourglass_forward.30} parent=5 // pred_check_branch
      %282 = sbr.rel (%p280) target = $region36
    $region35: #{hourglass_forward.30} parent=5 // pred_region
      %s283 = ssub.s32 %s8, 2
      // Predicated region
      $region37: #{hourglass_forward.30} parent=35 // pred_check
        %p284 = pneg %p105
      $region38: #{hourglass_forward.30} parent=35 // pred_check_branch
        %286 = sbr.rel (%p284) target = $region40
      $region39: #{hourglass_forward.30} parent=35 // pred_region
        %p287 = scmp.lt.s32.totalorder %s19, 7
        %s288 = scalar_select %p287, %s19, 7
        %p289 = scmp.lt.s32.totalorder %s20, 0
        %s290 = scalar_select %p289, %s20, 0
        %s291 = sadd.s32 %s290, %s288
        %s292 = smul.addr %s291, 4
        %s293 = scalar_lea.vmem %s2, %s292
      $region40: #{hourglass_forward.30} parent=35 // pred_fallthru
        _
    $region36: #{hourglass_forward.30} parent=5 // pred_fallthru
      _
  $region6: #{hourglass_forward.30} parent=0 // loop_footer
    %s12 = sadd.s32 1, %s8
  $region7: #{hourglass_forward.30} parent=0 // loop_footer_branch
    %7 = sbr.rel target = $region3
  $region8: #{hourglass_forward.30} parent=0 // loop_exit
    _

// kernel: hourglass_forward.31
$region0: #{hourglass_forward.31}
  #allocation0 [shape = 'u32[]', space=smem, size = 0x4, offset = 0x4, fixed_abs, tag = 'smem constant byte address 0x4 - core index']
  #allocation1 [shape = 'u32[144,128]{1,0:T(1,128)}', space=vmem, size = 0x12000, scoped, tag = 'internal scratch']
  %s0 = inlined_call_operand.vmem [shape: f32[4,1024], index: 0, kind: input, shape index: {}]
  %s1 = inlined_call_operand.vmem [shape: f32[4,1], index: 1, kind: input, shape index: {}]
  %s2 = inlined_call_operand.vmem [shape: f32[4,1], index: 2, kind: input, shape index: {}]
  %s3 = inlined_call_operand.vmem [shape: f32[4,1024], index: 3, kind: input, shape index: {}]
  %s4 = inlined_call_operand.vmem [shape: f32[4,1024], index: 4, kind: output, shape index: {}]
  %s5 = sld [smem:[#allocation0]]
  $region26: #{hourglass_forward.31} parent=0
    _
  %s7 = ssub.s32 1, %s5
  %s8 = scalar_select 0, %s7, %s5
  // Predicated region
  $region2: #{hourglass_forward.31} parent=0 // pred_check
    _
  $region3: #{hourglass_forward.31} parent=0 // pred_check_branch
    %10 = sbr.rel (0) target = $region5
  $region4: #{hourglass_forward.31} parent=0 // pred_region
    _
  $region5: #{hourglass_forward.31} parent=0 // pred_fallthru
    _
  // Predicated region
  $region6: #{hourglass_forward.31} parent=0 // pred_check
    _
  $region7: #{hourglass_forward.31} parent=0 // pred_check_branch
    %12 = sbr.rel (0) target = $region9
  $region8: #{hourglass_forward.31} parent=0 // pred_region
    _
  $region9: #{hourglass_forward.31} parent=0 // pred_fallthru
    _
  // Predicated region
  $region10: #{hourglass_forward.31} parent=0 // pred_check
    _
  $region11: #{hourglass_forward.31} parent=0 // pred_check_branch
    %14 = sbr.rel (0) target = $region13
  $region12: #{hourglass_forward.31} parent=0 // pred_region
    _
  $region13: #{hourglass_forward.31} parent=0 // pred_fallthru
    _
  // Predicated region
  $region14: #{hourglass_forward.31} parent=0 // pred_check
    _
  $region15: #{hourglass_forward.31} parent=0 // pred_check_branch
    %16 = sbr.rel (0) target = $region17
  $region16: #{hourglass_forward.31} parent=0 // pred_region
    _
  $region17: #{hourglass_forward.31} parent=0 // pred_fallthru
    _
  %v17 = vld [vmem:[%s0] sm:$0xff]
  %v18 = vld [vmem:[%s0 + $0x8] sm:$0xff]
  %v19 = vld [vmem:[%s0 + $0x10] sm:$0xff]
  %v20 = vld [vmem:[%s0 + $0x18] sm:$0xff]
  %v21 = vld [vmem:[%s1] sm:$0xf]
  %23 = vset.pattern.permute.xlu0 0
  %24 = vperm.xlu0 %23, %v21
  %v25 = vpop.permute.xlu0 %24
  %v27 = vunpack.c.l.s4 839922192
  %v28 = vunpack.c.0.s8 %v27
  %v29 = vlaneseq
  %v30 = vshrl.u32 %v29, 7
  %v31 = vsub.s32 %v28, %v30
  %v32 = vrot.slane %v25, %v31
  %v34 = vmul.f32 %v17, %v32
  %v35 = vmul.f32 %v18, %v32
  %v36 = vmul.f32 %v19, %v32
  %v37 = vmul.f32 %v20, %v32
  %v38 = vld [vmem:[%s2] sm:$0xf]
  %40 = vset.pattern.permute.xlu0 0
  %41 = vperm.xlu0 %40, %v38
  %v42 = vpop.permute.xlu0 %41
  %v44 = vunpack.c.l.s4 839922192
  %v45 = vunpack.c.0.s8 %v44
  %v46 = vlaneseq
  %v47 = vshrl.u32 %v46, 7
  %v48 = vsub.s32 %v45, %v47
  %v49 = vrot.slane %v42, %v48
  %v51 = vadd.f32 %v34, %v49
  %v52 = vadd.f32 %v35, %v49
  %v53 = vadd.f32 %v36, %v49
  %v54 = vadd.f32 %v37, %v49
  %vm55 = vcmp.ge.f32.partialorder %v51, 0.0
  %vm56 = vcmp.ge.f32.partialorder %v52, 0.0
  %vm57 = vcmp.ge.f32.partialorder %v53, 0.0
  %vm58 = vcmp.ge.f32.partialorder %v54, 0.0
  %v59 = vmul.f32 %v51, 0.2
  %v60 = vmul.f32 %v52, 0.2
  %v61 = vmul.f32 %v53, 0.2
  %v62 = vmul.f32 %v54, 0.2
  %v63 = vsel %vm55, %v51, %v59
  %v64 = vsel %vm56, %v52, %v60
  %v65 = vsel %vm57, %v53, %v61
  %v66 = vsel %vm58, %v54, %v62
  %v67 = vld [vmem:[%s3] sm:$0xff]
  %v68 = vld [vmem:[%s3 + $0x8] sm:$0xff]
  %v69 = vld [vmem:[%s3 + $0x10] sm:$0xff]
  %v70 = vld [vmem:[%s3 + $0x18] sm:$0xff]
  %v71 = vadd.f32 %v63, %v67
  %v72 = vadd.f32 %v64, %v68
  %v73 = vadd.f32 %v65, %v69
  %v74 = vadd.f32 %v66, %v70
  %75 = vst [vmem:[%s4] sm:$0xff] %v71
  %76 = vst [vmem:[%s4 + $0x8] sm:$0xff] %v72
  %77 = vst [vmem:[%s4 + $0x10] sm:$0xff] %v73
  %78 = vst [vmem:[%s4 + $0x18] sm:$0xff] %v74
  // Predicated region
  $region18: #{hourglass_forward.31} parent=0 // pred_check
    _
  $region19: #{hourglass_forward.31} parent=0 // pred_check_branch
    %80 = sbr.rel (0) target = $region21
  $region20: #{hourglass_forward.31} parent=0 // pred_region
    _
  $region21: #{hourglass_forward.31} parent=0 // pred_fallthru
    _
  // Predicated region
  $region22: #{hourglass_forward.31} parent=0 // pred_check
    _
  $region23: #{hourglass_forward.31} parent=0 // pred_check_branch
    %82 = sbr.rel (0) target = $region25
  $region24: #{hourglass_forward.31} parent=0 // pred_region
    _
  $region25: #{hourglass_forward.31} parent=0 // pred_fallthru
    _

</llo_original>
